<compile_context>
chip_gen: v7x
topology: tpu7x:2x2x1
jax: 0.10.0
libtpu: 0.0.40
codegen_flags: <defaults>
</compile_context>

<pallas_src>
import jax
import jax.numpy as jnp
from jax import lax
from jax.experimental import pallas as pl
from jax.experimental.pallas import tpu as pltpu

EPS = 1e-5
NEG_SLOPE = 0.01          # PyTorch nn.LeakyReLU default
TILE_M = 1024             # row tile (multiple of 16; a few MiB of VMEM per stage)


# ------------------------------- helpers ----------------------------------- #

def _round_up(x, m):
    return ((x + m - 1) // m) * m


def _choose_tiling(m):
    """Return (padded M, row-tile)."""
    if m <= TILE_M:
        mp = _round_up(m, 16)
        return mp, mp
    mp = _round_up(m, TILE_M)
    return mp, TILE_M


def _cparams():
    return pltpu.CompilerParams(
        dimension_semantics=("parallel",),
        vmem_limit_bytes=48 * 1024 * 1024,
    )


def _emit_stats(stats_ref, y_f32, tile_m, m_valid, mask_needed):
    """Write per-tile [sum, sumsq] over valid rows (padded rows masked out)."""
    yv = y_f32
    if mask_needed:
        rows = pl.program_id(0) * tile_m + lax.broadcasted_iota(
            jnp.int32, (tile_m, 1), 0)
        yv = jnp.where(rows < m_valid, y_f32, 0.0)
    s = jnp.sum(yv, axis=0, keepdims=True)            # (1, C)
    ss = jnp.sum(yv * yv, axis=0, keepdims=True)      # (1, C)
    stats_ref[...] = jnp.concatenate([s, ss], axis=0).reshape(1, 2, -1)


# ------------------------------- kernels ------------------------------------ #

def _make_conv_kernel(tile_m, m_valid, m_pad):
    """y = x @ w + b (bf16 MXU, f32 acc) + per-tile BN stats of y."""
    mask_needed = (m_valid != m_pad)

    def kernel(x_ref, w_ref, b_ref, y_ref, stats_ref):
        x = x_ref[...].astype(jnp.bfloat16)
        y = jnp.dot(x, w_ref[...], preferred_element_type=jnp.float32) + b_ref[...]
        y_ref[...] = y.astype(y_ref.dtype)
        _emit_stats(stats_ref, y, tile_m, m_valid, mask_needed)

    return kernel


def _make_bn_act_matmul_kernel(tile_m, m_valid, m_pad):
    """Apply previous layer's BN affine + LeakyReLU, then matmul; emit stats."""
    mask_needed = (m_valid != m_pad)

    def kernel(x_ref, sc_ref, sh_ref, w_ref, b_ref, y_ref, stats_ref):
        x = x_ref[...].astype(jnp.float32)
        x = x * sc_ref[...] + sh_ref[...]                    # BN (training stats)
        x = jnp.where(x >= 0, x, NEG_SLOPE * x)              # LeakyReLU
        y = jnp.dot(x.astype(jnp.bfloat16), w_ref[...],
                    preferred_element_type=jnp.float32) + b_ref[...]
        y_ref[...] = y.astype(y_ref.dtype)
        _emit_stats(stats_ref, y, tile_m, m_valid, mask_needed)

    return kernel


def _head_kernel(x_ref, sc_ref, sh_ref, w5_ref, b5_ref, s_ref):
    """BN4 + LeakyReLU + Conv(512->1) as a lane reduction + sigmoid."""
    x = x_ref[...].astype(jnp.float32)
    x = x * sc_ref[...] + sh_ref[...]
    x = jnp.where(x >= 0, x, NEG_SLOPE * x)
    h = jnp.sum(x * w5_ref[...], axis=-1, keepdims=True) + b5_ref[...]
    s_ref[...] = 1.0 / (1.0 + jnp.exp(-h))


# ---------------------------- pallas_call glue ------------------------------- #

def _run_conv_stage(x, w, b, m_valid, tile_m):
    m_pad, k = x.shape
    c = w.shape[1]
    t = m_pad // tile_m
    return pl.pallas_call(
        _make_conv_kernel(tile_m, m_valid, m_pad),
        out_shape=(jax.ShapeDtypeStruct((m_pad, c), jnp.bfloat16),
                   jax.ShapeDtypeStruct((t, 2, c), jnp.float32)),
        grid=(t,),
        in_specs=[pl.BlockSpec((tile_m, k), lambda i: (i, 0)),
                  pl.BlockSpec((k, c), lambda i: (0, 0)),
                  pl.BlockSpec((1, c), lambda i: (0, 0))],
        out_specs=(pl.BlockSpec((tile_m, c), lambda i: (i, 0)),
                   pl.BlockSpec((1, 2, c), lambda i: (i, 0, 0))),
        compiler_params=_cparams(),
    )(x, w, b)


def _run_bn_act_matmul(x, sc, sh, w, b, m_valid, tile_m):
    m_pad, k = x.shape
    c = w.shape[1]
    t = m_pad // tile_m
    return pl.pallas_call(
        _make_bn_act_matmul_kernel(tile_m, m_valid, m_pad),
        out_shape=(jax.ShapeDtypeStruct((m_pad, c), jnp.bfloat16),
                   jax.ShapeDtypeStruct((t, 2, c), jnp.float32)),
        grid=(t,),
        in_specs=[pl.BlockSpec((tile_m, k), lambda i: (i, 0)),
                  pl.BlockSpec((1, k), lambda i: (0, 0)),
                  pl.BlockSpec((1, k), lambda i: (0, 0)),
                  pl.BlockSpec((k, c), lambda i: (0, 0)),
                  pl.BlockSpec((1, c), lambda i: (0, 0))],
        out_specs=(pl.BlockSpec((tile_m, c), lambda i: (i, 0)),
                   pl.BlockSpec((1, 2, c), lambda i: (i, 0, 0))),
        compiler_params=_cparams(),
    )(x, sc, sh, w, b)


def _run_head_stage(x, sc, sh, w5_row, b5, tile_m):
    m_pad, k = x.shape
    t = m_pad // tile_m
    return pl.pallas_call(
        _head_kernel,
        out_shape=jax.ShapeDtypeStruct((m_pad, 1), jnp.float32),
        grid=(t,),
        in_specs=[pl.BlockSpec((tile_m, k), lambda i: (i, 0)),
                  pl.BlockSpec((1, k), lambda i: (0, 0)),
                  pl.BlockSpec((1, k), lambda i: (0, 0)),
                  pl.BlockSpec((1, k), lambda i: (0, 0)),
                  pl.BlockSpec((1, 1), lambda i: (0, 0))],
        out_specs=pl.BlockSpec((tile_m, 1), lambda i: (i, 0)),
        compiler_params=_cparams(),
    )(x, sc, sh, w5_row, b5)


def _bn_affine(stats, m_valid, gamma, beta):
    """Reduce per-tile [sum, sumsq] -> per-channel (scale, shift) vectors."""
    tot = jnp.sum(stats, axis=0)                      # (2, C)
    mean = tot[0] / float(m_valid)
    var = tot[1] / float(m_valid) - mean * mean       # biased variance
    scale = gamma[0] * lax.rsqrt(var + EPS)
    shift = beta[0] - mean * scale
    return scale[None, :], shift[None, :]             # (1, C) each, f32


def im2col(x_nhwc, k, s):
    """Extract (kh, kw, c)-ordered patches -> (N*Ho*Wo, k*k*C)."""
    n, h, w, c = x_nhwc.shape
    ho = (h - k) // s + 1
    wo = (w - k) // s + 1
    cols = []
    for i in range(k):
        for j in range(k):
            cols.append(x_nhwc[:, i:i + s * (ho - 1) + 1:s, j:j + s * (wo - 1) + 1:s, :])
    p = jnp.stack(cols, axis=3)                       # (N, Ho, Wo, k*k, C)
    return p.reshape(n * ho * wo, k * k * c), (n, ho, wo)


# ------------------------------- forward ------------------------------------ #

def discriminator_forward(x_nchw, p):
    x = jnp.transpose(x_nchw, (0, 2, 3, 1)).astype(jnp.float32)  # NCHW -> NHWC

    # ---- Conv2d(in, 64, 4, 2): pre-BN activation + BN1 stats ----
    x1, (n, h1, w1) = im2col(x, 4, 2)                 # (M1, 4*4*Cin)
    m1, k1 = x1.shape
    k1p = _round_up(k1, 64)                           # pad contraction dim
    m1_pad, tile1 = _choose_tiling(m1)
    x1 = jnp.pad(x1, ((0, m1_pad - m1), (0, k1p - k1))).astype(jnp.bfloat16)
    w1m = jnp.pad(p['w1'], ((0, k1p - k1), (0, 0))).astype(jnp.bfloat16)
    y1p, st1 = _run_conv_stage(x1, w1m, p['b1'], m1, tile1)      # (m1_pad, 64) bf16
    sc1, sh1 = _bn_affine(st1, m1, p['g1'], p['be1'])

    # ---- Conv2d(64, 128, 4, 2): BN1+LReLU folded per-column into this matmul ----
    # (BN/LReLU are per-channel/elementwise, so applying them to the im2col copies
    #  of the pre-BN y1 is mathematically identical to im2col(BN+LReLU(y1)).)
    y1p = y1p[:m1].reshape(n, h1, w1, 64)
    x2, (n, h2, w2) = im2col(y1p, 4, 2)               # bf16 (M2, 1024)
    m2 = x2.shape[0]
    m2_pad, tile2 = _choose_tiling(m2)
    x2 = jnp.pad(x2, ((0, m2_pad - m2), (0, 0)))
    sc1c = jnp.tile(sc1, (1, 16))                     # per-column (1, 1024)
    sh1c = jnp.tile(sh1, (1, 16))
    y2p, st2 = _run_bn_act_matmul(x2, sc1c, sh1c,
                                  p['w2'].astype(jnp.bfloat16), p['b2'], m2, tile2)
    sc2, sh2 = _bn_affine(st2, m2, p['g2'], p['be2'])

    # ---- 1x1 conv chain: BN_i+LReLU fused in front of conv_{i+1} ----
    y3p, st3 = _run_bn_act_matmul(y2p, sc2, sh2,
                                  p['w3'].astype(jnp.bfloat16), p['b3'], m2, tile2)
    sc3, sh3 = _bn_affine(st3, m2, p['g3'], p['be3'])
    y4p, st4 = _run_bn_act_matmul(y3p, sc3, sh3,
                                  p['w4'].astype(jnp.bfloat16), p['b4'], m2, tile2)
    sc4, sh4 = _bn_affine(st4, m2, p['g4'], p['be4'])

    # ---- head: BN4+LReLU + Conv(512->1) lane reduction + sigmoid ----
    s = _run_head_stage(y4p, sc4, sh4, jnp.transpose(p['w5']), p['b5'], tile2)
    s = s[:m2, 0].reshape(n, h2 * w2)
    return jnp.mean(s, axis=1)                        # torch.mean(x, dim=(1,2,3))


# ------------------------------ parameters ----------------------------------- #

def init_params(key, in_chans=3):
    ks = jax.random.split(key, 22)

    def rnd(k, shape, scale):
        return scale * jax.random.normal(k, shape, jnp.float32)

    return dict(
        # conv weights stored as (KH*KW*Cin, Cout) matching im2col (kh, kw, c) order
        w1=rnd(ks[0], (4 * 4 * in_chans, 64), 0.08), b1=rnd(ks[1], (1, 64), 0.05),
        g1=1.0 + rnd(ks[2], (1, 64), 0.05),          be1=rnd(ks[3], (1, 64), 0.05),
        w2=rnd(ks[4], (4 * 4 * 64, 128), 0.03),      b2=rnd(ks[5], (1, 128), 0.05),
        g2=1.0 + rnd(ks[6], (1, 128), 0.05),         be2=rnd(ks[7], (1, 128), 0.05),
        w3=rnd(ks[8], (128, 256), 0.05),             b3=rnd(ks[9], (1, 256), 0.05),
        g3=1.0 + rnd(ks[10], (1, 256), 0.05),        be3=rnd(ks[11], (1, 256), 0.05),
        w4=rnd(ks[12], (256, 512), 0.04),            b4=rnd(ks[13], (1, 512), 0.05),
        g4=1.0 + rnd(ks[14], (1, 512), 0.05),        be4=rnd(ks[15], (1, 512), 0.05),
        w5=rnd(ks[16], (512, 1), 0.04),              b5=rnd(ks[17], (1, 1), 0.05),
    )


# --------------------------- pure-JAX reference ------------------------------ #

def reference_forward(x_nchw, p, in_chans=3):
    x = jnp.transpose(x_nchw, (0, 2, 3, 1)).astype(jnp.float32)

    def conv(z, wmat, k, s, cin, cout):
        wk = wmat.reshape(k, k, cin, cout)  # HWIO, matches im2col (kh, kw, c) order
        return lax.conv_general_dilated(z, wk, (s, s), 'VALID',
                                        dimension_numbers=('NHWC', 'HWIO', 'NHWC'))

    def bn_lrelu(y, g, be):
        mean = jnp.mean(y, axis=(0, 1, 2), keepdims=True)
        var = jnp.mean(jnp.square(y - mean), axis=(0, 1, 2), keepdims=True)
        yn = (y - mean) / jnp.sqrt(var + EPS) * g.reshape(1, 1, 1, -1) + be.reshape(1, 1, 1, -1)
        return jnp.where(yn >= 0, yn, NEG_SLOPE * yn)

    y = conv(x, p['w1'], 4, 2, in_chans, 64) + p['b1'].reshape(1, 1, 1, -1)
    y = bn_lrelu(y, p['g1'], p['be1'])
    y = conv(y, p['w2'], 4, 2, 64, 128) + p['b2'].reshape(1, 1, 1, -1)
    y = bn_lrelu(y, p['g2'], p['be2'])
    y = conv(y, p['w3'], 1, 1, 128, 256) + p['b3'].reshape(1, 1, 1, -1)
    y = bn_lrelu(y, p['g3'], p['be3'])
    y = conv(y, p['w4'], 1, 1, 256, 512) + p['b4'].reshape(1, 1, 1, -1)
    y = bn_lrelu(y, p['g4'], p['be4'])
    y = conv(y, p['w5'], 1, 1, 512, 1) + p['b5'].reshape(1, 1, 1, -1)
    y = jax.nn.sigmoid(y)
    return jnp.mean(y, axis=(1, 2, 3))


# ----------------------------------- main ------------------------------------ #

if __name__ == "__main__":
    key = jax.random.PRNGKey(0)
    pkey, xkey = jax.random.split(key)
    in_chans = 3
    params = init_params(pkey, in_chans)

    x = jax.random.normal(xkey, (2, in_chans, 16, 16), jnp.float32)  # NCHW like PyTorch

    fwd = jax.jit(discriminator_forward)
    out = jax.block_until_ready(fwd(x, params))

    ref = reference_forward(x, params, in_chans)
    assert out.shape == (2,), out.shape
    # bf16 MXU operands / bf16 inter-stage storage vs. a pure-f32 reference.
    assert jnp.allclose(out, ref, atol=2e-2, rtol=2e-2), (out, ref)

    print("KERNEL_OK")
</pallas_src>

<mosaic_0001>
module attributes {stable_mosaic.version = 11 : i64} {
  func.func @kernel(%arg0: i32, %arg1: memref<112x64xbf16, #tpu.memory_space<vmem>>, %arg2: memref<64x64xbf16, #tpu.memory_space<vmem>>, %arg3: memref<1x64xf32, #tpu.memory_space<vmem>>, %arg4: memref<112x64xbf16, #tpu.memory_space<vmem>>, %arg5: memref<1x2x64xf32, #tpu.memory_space<vmem>>) attributes {dimension_semantics = [#tpu.dimension_semantics<parallel>], iteration_bounds = array<i64: 1>, scalar_prefetch = 0 : i64, scratch_operands = 0 : i64, tpu.core_type = #tpu.core_type<tc>, window_params = [{transform_indices = @transform_0, window_bounds = array<i64: 112, 64>}, {pipeline_mode = #tpu.pipeline_mode<synchronous>, transform_indices = @transform_1, window_bounds = array<i64: 64, 64>}, {pipeline_mode = #tpu.pipeline_mode<synchronous>, transform_indices = @transform_2, window_bounds = array<i64: 1, 64>}, {transform_indices = @transform_3, window_bounds = array<i64: 112, 64>}, {transform_indices = @transform_4, window_bounds = array<i64: 1, 2, 64>}]} {
    %c0 = arith.constant 0 : index
    %c0_0 = arith.constant 0 : index
    %0 = vector.load %arg1[%c0, %c0_0] : memref<112x64xbf16, #tpu.memory_space<vmem>>, vector<112x64xbf16>
    %c0_1 = arith.constant 0 : index
    %c0_2 = arith.constant 0 : index
    %1 = vector.load %arg2[%c0_1, %c0_2] : memref<64x64xbf16, #tpu.memory_space<vmem>>, vector<64x64xbf16>
    %cst = arith.constant dense<0.000000e+00> : vector<112x64xf32>
    %2 = tpu.matmul %0, %1, %cst {dimension_numbers = #tpu.dot_dimension_numbers<[1], [0], [0], [1], [0, 0, 1, 1], [], []>} : vector<112x64xbf16>, vector<64x64xbf16>, vector<112x64xf32> -> vector<112x64xf32>
    %c0_3 = arith.constant 0 : index
    %c0_4 = arith.constant 0 : index
    %3 = vector.load %arg3[%c0_3, %c0_4] : memref<1x64xf32, #tpu.memory_space<vmem>>, vector<1x64xf32>
    %4 = vector.broadcast %3 : vector<1x64xf32> to vector<112x64xf32>
    %5 = arith.addf %2, %4 : vector<112x64xf32>
    %6 = arith.truncf %5 : vector<112x64xf32> to vector<112x64xbf16>
    %c0_5 = arith.constant 0 : index
    %c0_6 = arith.constant 0 : index
    %7 = vector.load %arg4[%c0_5, %c0_6] : memref<112x64xbf16, #tpu.memory_space<vmem>>, vector<112x64xbf16>
    tpu.vector_store %arg4[%c0_5, %c0_6], %6 {strides = array<i32>} : memref<112x64xbf16, #tpu.memory_space<vmem>>, vector<112x64xbf16>,
    %c112_i32 = arith.constant 112 : i32
    %8 = arith.muli %arg0, %c112_i32 : i32
    %9 = tpu.iota {dimensions = array<i32: 0>} : vector<112x1xi32>
    %10 = vector.broadcast %8 : i32 to vector<112x1xi32>
    %11 = arith.addi %10, %9 : vector<112x1xi32>
    %c98_i32 = arith.constant 98 : i32
    %12 = vector.broadcast %c98_i32 : i32 to vector<112x1xi32>
    %13 = arith.cmpi slt, %11, %12 : vector<112x1xi32>
    %cst_7 = arith.constant 0.000000e+00 : f32
    %14 = vector.shape_cast %13 : vector<112x1xi1> to vector<112x1xi1>
    %15 = vector.broadcast %14 : vector<112x1xi1> to vector<112x64xi1>
    %16 = vector.broadcast %cst_7 : f32 to vector<112x64xf32>
    %17 = arith.select %15, %5, %16 : vector<112x64xi1>, vector<112x64xf32>
    %cst_8 = arith.constant dense<0.000000e+00> : vector<64xf32>
    %18 = vector.multi_reduction <add>, %17, %cst_8 [0] : vector<112x64xf32> to vector<64xf32>
    %19 = vector.shape_cast %18 : vector<64xf32> to vector<1x64xf32>
    %20 = arith.mulf %17, %17 : vector<112x64xf32>
    %cst_9 = arith.constant dense<0.000000e+00> : vector<64xf32>
    %21 = vector.multi_reduction <add>, %20, %cst_9 [0] : vector<112x64xf32> to vector<64xf32>
    %22 = vector.shape_cast %21 : vector<64xf32> to vector<1x64xf32>
    %23 = tpu.concatenate %19, %22 in 0 : vector<1x64xf32>, vector<1x64xf32> -> vector<2x64xf32>
    %24 = vector.shape_cast %23 : vector<2x64xf32> to vector<1x2x64xf32>
    %c0_10 = arith.constant 0 : index
    %c0_11 = arith.constant 0 : index
    %c0_12 = arith.constant 0 : index
    %25 = vector.load %arg5[%c0_10, %c0_11, %c0_12] : memref<1x2x64xf32, #tpu.memory_space<vmem>>, vector<1x2x64xf32>
    tpu.vector_store %arg5[%c0_10, %c0_11, %c0_12], %24 {strides = array<i32>} : memref<1x2x64xf32, #tpu.memory_space<vmem>>, vector<1x2x64xf32>,
    return
  }
  func.func @transform_0(%arg0: i32) -> (i32, i32) {
    %c0_i32 = arith.constant 0 : i32
    %c0_i32_0 = arith.constant 0 : i32
    return %arg0, %c0_i32 : i32, i32
  }
  func.func @transform_1(%arg0: i32) -> (i32, i32) {
    %c0_i32 = arith.constant 0 : i32
    %c0_i32_0 = arith.constant 0 : i32
    %c0_i32_1 = arith.constant 0 : i32
    return %c0_i32, %c0_i32_0 : i32, i32
  }
  func.func @transform_2(%arg0: i32) -> (i32, i32) {
    %c0_i32 = arith.constant 0 : i32
    %c0_i32_0 = arith.constant 0 : i32
    %c0_i32_1 = arith.constant 0 : i32
    return %c0_i32, %c0_i32_0 : i32, i32
  }
  func.func @transform_3(%arg0: i32) -> (i32, i32) {
    %c0_i32 = arith.constant 0 : i32
    %c0_i32_0 = arith.constant 0 : i32
    return %arg0, %c0_i32 : i32, i32
  }
  func.func @transform_4(%arg0: i32) -> (i32, i32, i32) {
    %c0_i32 = arith.constant 0 : i32
    %c0_i32_0 = arith.constant 0 : i32
    %c0_i32_1 = arith.constant 0 : i32
    return %arg0, %c0_i32, %c0_i32_0 : i32, i32, i32
  }
}

module attributes {stable_mosaic.version = 11 : i64} {
  func.func @kernel(%arg0: i32, %arg1: memref<16x128xbf16, #tpu.memory_space<vmem>>, %arg2: memref<1x128xf32, #tpu.memory_space<vmem>>, %arg3: memref<1x128xf32, #tpu.memory_space<vmem>>, %arg4: memref<128x256xbf16, #tpu.memory_space<vmem>>, %arg5: memref<1x256xf32, #tpu.memory_space<vmem>>, %arg6: memref<16x256xbf16, #tpu.memory_space<vmem>>, %arg7: memref<1x2x256xf32, #tpu.memory_space<vmem>>) attributes {dimension_semantics = [#tpu.dimension_semantics<parallel>], iteration_bounds = array<i64: 1>, scalar_prefetch = 0 : i64, scratch_operands = 0 : i64, tpu.core_type = #tpu.core_type<tc>, window_params = [{transform_indices = @transform_0, window_bounds = array<i64: 16, 128>}, {pipeline_mode = #tpu.pipeline_mode<synchronous>, transform_indices = @transform_1, window_bounds = array<i64: 1, 128>}, {pipeline_mode = #tpu.pipeline_mode<synchronous>, transform_indices = @transform_2, window_bounds = array<i64: 1, 128>}, {pipeline_mode = #tpu.pipeline_mode<synchronous>, transform_indices = @transform_3, window_bounds = array<i64: 128, 256>}, {pipeline_mode = #tpu.pipeline_mode<synchronous>, transform_indices = @transform_4, window_bounds = array<i64: 1, 256>}, {transform_indices = @transform_5, window_bounds = array<i64: 16, 256>}, {transform_indices = @transform_6, window_bounds = array<i64: 1, 2, 256>}]} {
    %c0 = arith.constant 0 : index
    %c0_0 = arith.constant 0 : index
    %0 = vector.load %arg1[%c0, %c0_0] : memref<16x128xbf16, #tpu.memory_space<vmem>>, vector<16x128xbf16>
    %1 = arith.extf %0 : vector<16x128xbf16> to vector<16x128xf32>
    %c0_1 = arith.constant 0 : index
    %c0_2 = arith.constant 0 : index
    %2 = vector.load %arg2[%c0_1, %c0_2] : memref<1x128xf32, #tpu.memory_space<vmem>>, vector<1x128xf32>
    %3 = vector.broadcast %2 : vector<1x128xf32> to vector<16x128xf32>
    %4 = arith.mulf %1, %3 : vector<16x128xf32>
    %c0_3 = arith.constant 0 : index
    %c0_4 = arith.constant 0 : index
    %5 = vector.load %arg3[%c0_3, %c0_4] : memref<1x128xf32, #tpu.memory_space<vmem>>, vector<1x128xf32>
    %6 = vector.broadcast %5 : vector<1x128xf32> to vector<16x128xf32>
    %7 = arith.addf %4, %6 : vector<16x128xf32>
    %cst = arith.constant 0.000000e+00 : f32
    %8 = vector.broadcast %cst : f32 to vector<16x128xf32>
    %9 = arith.cmpf oge, %7, %8 : vector<16x128xf32>
    %cst_5 = arith.constant 0.00999999977 : f32
    %10 = vector.broadcast %cst_5 : f32 to vector<16x128xf32>
    %11 = arith.mulf %10, %7 : vector<16x128xf32>
    %12 = arith.select %9, %7, %11 : vector<16x128xi1>, vector<16x128xf32>
    %13 = arith.truncf %12 : vector<16x128xf32> to vector<16x128xbf16>
    %c0_6 = arith.constant 0 : index
    %c0_7 = arith.constant 0 : index
    %14 = vector.load %arg4[%c0_6, %c0_7] : memref<128x256xbf16, #tpu.memory_space<vmem>>, vector<128x256xbf16>
    %cst_8 = arith.constant dense<0.000000e+00> : vector<16x256xf32>
    %15 = tpu.matmul %13, %14, %cst_8 {dimension_numbers = #tpu.dot_dimension_numbers<[1], [0], [0], [1], [0, 0, 1, 1], [], []>} : vector<16x128xbf16>, vector<128x256xbf16>, vector<16x256xf32> -> vector<16x256xf32>
    %c0_9 = arith.constant 0 : index
    %c0_10 = arith.constant 0 : index
    %16 = vector.load %arg5[%c0_9, %c0_10] : memref<1x256xf32, #tpu.memory_space<vmem>>, vector<1x256xf32>
    %17 = vector.broadcast %16 : vector<1x256xf32> to vector<16x256xf32>
    %18 = arith.addf %15, %17 : vector<16x256xf32>
    %19 = arith.truncf %18 : vector<16x256xf32> to vector<16x256xbf16>
    %c0_11 = arith.constant 0 : index
    %c0_12 = arith.constant 0 : index
    %20 = vector.load %arg6[%c0_11, %c0_12] : memref<16x256xbf16, #tpu.memory_space<vmem>>, vector<16x256xbf16>
    tpu.vector_store %arg6[%c0_11, %c0_12], %19 {strides = array<i32>} : memref<16x256xbf16, #tpu.memory_space<vmem>>, vector<16x256xbf16>,
    %c16_i32 = arith.constant 16 : i32
    %21 = arith.muli %arg0, %c16_i32 : i32
    %22 = tpu.iota {dimensions = array<i32: 0>} : vector<16x1xi32>
    %23 = vector.broadcast %21 : i32 to vector<16x1xi32>
    %24 = arith.addi %23, %22 : vector<16x1xi32>
    %c8_i32 = arith.constant 8 : i32
    %25 = vector.broadcast %c8_i32 : i32 to vector<16x1xi32>
    %26 = arith.cmpi slt, %24, %25 : vector<16x1xi32>
    %cst_13 = arith.constant 0.000000e+00 : f32
    %27 = vector.shape_cast %26 : vector<16x1xi1> to vector<16x1xi1>
    %28 = vector.broadcast %27 : vector<16x1xi1> to vector<16x256xi1>
    %29 = vector.broadcast %cst_13 : f32 to vector<16x256xf32>
    %30 = arith.select %28, %18, %29 : vector<16x256xi1>, vector<16x256xf32>
    %cst_14 = arith.constant dense<0.000000e+00> : vector<256xf32>
    %31 = vector.multi_reduction <add>, %30, %cst_14 [0] : vector<16x256xf32> to vector<256xf32>
    %32 = vector.shape_cast %31 : vector<256xf32> to vector<1x256xf32>
    %33 = arith.mulf %30, %30 : vector<16x256xf32>
    %cst_15 = arith.constant dense<0.000000e+00> : vector<256xf32>
    %34 = vector.multi_reduction <add>, %33, %cst_15 [0] : vector<16x256xf32> to vector<256xf32>
    %35 = vector.shape_cast %34 : vector<256xf32> to vector<1x256xf32>
    %36 = tpu.concatenate %32, %35 in 0 : vector<1x256xf32>, vector<1x256xf32> -> vector<2x256xf32>
    %37 = vector.shape_cast %36 : vector<2x256xf32> to vector<1x2x256xf32>
    %c0_16 = arith.constant 0 : index
    %c0_17 = arith.constant 0 : index
    %c0_18 = arith.constant 0 : index
    %38 = vector.load %arg7[%c0_16, %c0_17, %c0_18] : memref<1x2x256xf32, #tpu.memory_space<vmem>>, vector<1x2x256xf32>
    tpu.vector_store %arg7[%c0_16, %c0_17, %c0_18], %37 {strides = array<i32>} : memref<1x2x256xf32, #tpu.memory_space<vmem>>, vector<1x2x256xf32>,
    return
  }
  func.func @transform_0(%arg0: i32) -> (i32, i32) {
    %c0_i32 = arith.constant 0 : i32
    %c0_i32_0 = arith.constant 0 : i32
    return %arg0, %c0_i32 : i32, i32
  }
  func.func @transform_1(%arg0: i32) -> (i32, i32) {
    %c0_i32 = arith.constant 0 : i32
    %c0_i32_0 = arith.constant 0 : i32
    %c0_i32_1 = arith.constant 0 : i32
    return %c0_i32, %c0_i32_0 : i32, i32
  }
  func.func @transform_2(%arg0: i32) -> (i32, i32) {
    %c0_i32 = arith.constant 0 : i32
    %c0_i32_0 = arith.constant 0 : i32
    %c0_i32_1 = arith.constant 0 : i32
    return %c0_i32, %c0_i32_0 : i32, i32
  }
  func.func @transform_3(%arg0: i32) -> (i32, i32) {
    %c0_i32 = arith.constant 0 : i32
    %c0_i32_0 = arith.constant 0 : i32
    %c0_i32_1 = arith.constant 0 : i32
    return %c0_i32, %c0_i32_0 : i32, i32
  }
  func.func @transform_4(%arg0: i32) -> (i32, i32) {
    %c0_i32 = arith.constant 0 : i32
    %c0_i32_0 = arith.constant 0 : i32
    %c0_i32_1 = arith.constant 0 : i32
    return %c0_i32, %c0_i32_0 : i32, i32
  }
  func.func @transform_5(%arg0: i32) -> (i32, i32) {
    %c0_i32 = arith.constant 0 : i32
    %c0_i32_0 = arith.constant 0 : i32
    return %arg0, %c0_i32 : i32, i32
  }
  func.func @transform_6(%arg0: i32) -> (i32, i32, i32) {
    %c0_i32 = arith.constant 0 : i32
    %c0_i32_0 = arith.constant 0 : i32
    %c0_i32_1 = arith.constant 0 : i32
    return %arg0, %c0_i32, %c0_i32_0 : i32, i32, i32
  }
}

module attributes {stable_mosaic.version = 11 : i64} {
  func.func @kernel(%arg0: i32, %arg1: memref<16x1024xbf16, #tpu.memory_space<vmem>>, %arg2: memref<1x1024xf32, #tpu.memory_space<vmem>>, %arg3: memref<1x1024xf32, #tpu.memory_space<vmem>>, %arg4: memref<1024x128xbf16, #tpu.memory_space<vmem>>, %arg5: memref<1x128xf32, #tpu.memory_space<vmem>>, %arg6: memref<16x128xbf16, #tpu.memory_space<vmem>>, %arg7: memref<1x2x128xf32, #tpu.memory_space<vmem>>) attributes {dimension_semantics = [#tpu.dimension_semantics<parallel>], iteration_bounds = array<i64: 1>, scalar_prefetch = 0 : i64, scratch_operands = 0 : i64, tpu.core_type = #tpu.core_type<tc>, window_params = [{transform_indices = @transform_0, window_bounds = array<i64: 16, 1024>}, {pipeline_mode = #tpu.pipeline_mode<synchronous>, transform_indices = @transform_1, window_bounds = array<i64: 1, 1024>}, {pipeline_mode = #tpu.pipeline_mode<synchronous>, transform_indices = @transform_2, window_bounds = array<i64: 1, 1024>}, {pipeline_mode = #tpu.pipeline_mode<synchronous>, transform_indices = @transform_3, window_bounds = array<i64: 1024, 128>}, {pipeline_mode = #tpu.pipeline_mode<synchronous>, transform_indices = @transform_4, window_bounds = array<i64: 1, 128>}, {transform_indices = @transform_5, window_bounds = array<i64: 16, 128>}, {transform_indices = @transform_6, window_bounds = array<i64: 1, 2, 128>}]} {
    %c0 = arith.constant 0 : index
    %c0_0 = arith.constant 0 : index
    %0 = vector.load %arg1[%c0, %c0_0] : memref<16x1024xbf16, #tpu.memory_space<vmem>>, vector<16x1024xbf16>
    %1 = arith.extf %0 : vector<16x1024xbf16> to vector<16x1024xf32>
    %c0_1 = arith.constant 0 : index
    %c0_2 = arith.constant 0 : index
    %2 = vector.load %arg2[%c0_1, %c0_2] : memref<1x1024xf32, #tpu.memory_space<vmem>>, vector<1x1024xf32>
    %3 = vector.broadcast %2 : vector<1x1024xf32> to vector<16x1024xf32>
    %4 = arith.mulf %1, %3 : vector<16x1024xf32>
    %c0_3 = arith.constant 0 : index
    %c0_4 = arith.constant 0 : index
    %5 = vector.load %arg3[%c0_3, %c0_4] : memref<1x1024xf32, #tpu.memory_space<vmem>>, vector<1x1024xf32>
    %6 = vector.broadcast %5 : vector<1x1024xf32> to vector<16x1024xf32>
    %7 = arith.addf %4, %6 : vector<16x1024xf32>
    %cst = arith.constant 0.000000e+00 : f32
    %8 = vector.broadcast %cst : f32 to vector<16x1024xf32>
    %9 = arith.cmpf oge, %7, %8 : vector<16x1024xf32>
    %cst_5 = arith.constant 0.00999999977 : f32
    %10 = vector.broadcast %cst_5 : f32 to vector<16x1024xf32>
    %11 = arith.mulf %10, %7 : vector<16x1024xf32>
    %12 = arith.select %9, %7, %11 : vector<16x1024xi1>, vector<16x1024xf32>
    %13 = arith.truncf %12 : vector<16x1024xf32> to vector<16x1024xbf16>
    %c0_6 = arith.constant 0 : index
    %c0_7 = arith.constant 0 : index
    %14 = vector.load %arg4[%c0_6, %c0_7] : memref<1024x128xbf16, #tpu.memory_space<vmem>>, vector<1024x128xbf16>
    %cst_8 = arith.constant dense<0.000000e+00> : vector<16x128xf32>
    %15 = tpu.matmul %13, %14, %cst_8 {dimension_numbers = #tpu.dot_dimension_numbers<[1], [0], [0], [1], [0, 0, 1, 1], [], []>} : vector<16x1024xbf16>, vector<1024x128xbf16>, vector<16x128xf32> -> vector<16x128xf32>
    %c0_9 = arith.constant 0 : index
    %c0_10 = arith.constant 0 : index
    %16 = vector.load %arg5[%c0_9, %c0_10] : memref<1x128xf32, #tpu.memory_space<vmem>>, vector<1x128xf32>
    %17 = vector.broadcast %16 : vector<1x128xf32> to vector<16x128xf32>
    %18 = arith.addf %15, %17 : vector<16x128xf32>
    %19 = arith.truncf %18 : vector<16x128xf32> to vector<16x128xbf16>
    %c0_11 = arith.constant 0 : index
    %c0_12 = arith.constant 0 : index
    %20 = vector.load %arg6[%c0_11, %c0_12] : memref<16x128xbf16, #tpu.memory_space<vmem>>, vector<16x128xbf16>
    tpu.vector_store %arg6[%c0_11, %c0_12], %19 {strides = array<i32>} : memref<16x128xbf16, #tpu.memory_space<vmem>>, vector<16x128xbf16>,
    %c16_i32 = arith.constant 16 : i32
    %21 = arith.muli %arg0, %c16_i32 : i32
    %22 = tpu.iota {dimensions = array<i32: 0>} : vector<16x1xi32>
    %23 = vector.broadcast %21 : i32 to vector<16x1xi32>
    %24 = arith.addi %23, %22 : vector<16x1xi32>
    %c8_i32 = arith.constant 8 : i32
    %25 = vector.broadcast %c8_i32 : i32 to vector<16x1xi32>
    %26 = arith.cmpi slt, %24, %25 : vector<16x1xi32>
    %cst_13 = arith.constant 0.000000e+00 : f32
    %27 = vector.shape_cast %26 : vector<16x1xi1> to vector<16x1xi1>
    %28 = vector.broadcast %27 : vector<16x1xi1> to vector<16x128xi1>
    %29 = vector.broadcast %cst_13 : f32 to vector<16x128xf32>
    %30 = arith.select %28, %18, %29 : vector<16x128xi1>, vector<16x128xf32>
    %cst_14 = arith.constant dense<0.000000e+00> : vector<128xf32>
    %31 = vector.multi_reduction <add>, %30, %cst_14 [0] : vector<16x128xf32> to vector<128xf32>
    %32 = vector.shape_cast %31 : vector<128xf32> to vector<1x128xf32>
    %33 = arith.mulf %30, %30 : vector<16x128xf32>
    %cst_15 = arith.constant dense<0.000000e+00> : vector<128xf32>
    %34 = vector.multi_reduction <add>, %33, %cst_15 [0] : vector<16x128xf32> to vector<128xf32>
    %35 = vector.shape_cast %34 : vector<128xf32> to vector<1x128xf32>
    %36 = tpu.concatenate %32, %35 in 0 : vector<1x128xf32>, vector<1x128xf32> -> vector<2x128xf32>
    %37 = vector.shape_cast %36 : vector<2x128xf32> to vector<1x2x128xf32>
    %c0_16 = arith.constant 0 : index
    %c0_17 = arith.constant 0 : index
    %c0_18 = arith.constant 0 : index
    %38 = vector.load %arg7[%c0_16, %c0_17, %c0_18] : memref<1x2x128xf32, #tpu.memory_space<vmem>>, vector<1x2x128xf32>
    tpu.vector_store %arg7[%c0_16, %c0_17, %c0_18], %37 {strides = array<i32>} : memref<1x2x128xf32, #tpu.memory_space<vmem>>, vector<1x2x128xf32>,
    return
  }
  func.func @transform_0(%arg0: i32) -> (i32, i32) {
    %c0_i32 = arith.constant 0 : i32
    %c0_i32_0 = arith.constant 0 : i32
    return %arg0, %c0_i32 : i32, i32
  }
  func.func @transform_1(%arg0: i32) -> (i32, i32) {
    %c0_i32 = arith.constant 0 : i32
    %c0_i32_0 = arith.constant 0 : i32
    %c0_i32_1 = arith.constant 0 : i32
    return %c0_i32, %c0_i32_0 : i32, i32
  }
  func.func @transform_2(%arg0: i32) -> (i32, i32) {
    %c0_i32 = arith.constant 0 : i32
    %c0_i32_0 = arith.constant 0 : i32
    %c0_i32_1 = arith.constant 0 : i32
    return %c0_i32, %c0_i32_0 : i32, i32
  }
  func.func @transform_3(%arg0: i32) -> (i32, i32) {
    %c0_i32 = arith.constant 0 : i32
    %c0_i32_0 = arith.constant 0 : i32
    %c0_i32_1 = arith.constant 0 : i32
    return %c0_i32, %c0_i32_0 : i32, i32
  }
  func.func @transform_4(%arg0: i32) -> (i32, i32) {
    %c0_i32 = arith.constant 0 : i32
    %c0_i32_0 = arith.constant 0 : i32
    %c0_i32_1 = arith.constant 0 : i32
    return %c0_i32, %c0_i32_0 : i32, i32
  }
  func.func @transform_5(%arg0: i32) -> (i32, i32) {
    %c0_i32 = arith.constant 0 : i32
    %c0_i32_0 = arith.constant 0 : i32
    return %arg0, %c0_i32 : i32, i32
  }
  func.func @transform_6(%arg0: i32) -> (i32, i32, i32) {
    %c0_i32 = arith.constant 0 : i32
    %c0_i32_0 = arith.constant 0 : i32
    %c0_i32_1 = arith.constant 0 : i32
    return %arg0, %c0_i32, %c0_i32_0 : i32, i32, i32
  }
}

module attributes {stable_mosaic.version = 11 : i64} {
  func.func @kernel(%arg0: i32, %arg1: memref<16x256xbf16, #tpu.memory_space<vmem>>, %arg2: memref<1x256xf32, #tpu.memory_space<vmem>>, %arg3: memref<1x256xf32, #tpu.memory_space<vmem>>, %arg4: memref<256x512xbf16, #tpu.memory_space<vmem>>, %arg5: memref<1x512xf32, #tpu.memory_space<vmem>>, %arg6: memref<16x512xbf16, #tpu.memory_space<vmem>>, %arg7: memref<1x2x512xf32, #tpu.memory_space<vmem>>) attributes {dimension_semantics = [#tpu.dimension_semantics<parallel>], iteration_bounds = array<i64: 1>, scalar_prefetch = 0 : i64, scratch_operands = 0 : i64, tpu.core_type = #tpu.core_type<tc>, window_params = [{transform_indices = @transform_0, window_bounds = array<i64: 16, 256>}, {pipeline_mode = #tpu.pipeline_mode<synchronous>, transform_indices = @transform_1, window_bounds = array<i64: 1, 256>}, {pipeline_mode = #tpu.pipeline_mode<synchronous>, transform_indices = @transform_2, window_bounds = array<i64: 1, 256>}, {pipeline_mode = #tpu.pipeline_mode<synchronous>, transform_indices = @transform_3, window_bounds = array<i64: 256, 512>}, {pipeline_mode = #tpu.pipeline_mode<synchronous>, transform_indices = @transform_4, window_bounds = array<i64: 1, 512>}, {transform_indices = @transform_5, window_bounds = array<i64: 16, 512>}, {transform_indices = @transform_6, window_bounds = array<i64: 1, 2, 512>}]} {
    %c0 = arith.constant 0 : index
    %c0_0 = arith.constant 0 : index
    %0 = vector.load %arg1[%c0, %c0_0] : memref<16x256xbf16, #tpu.memory_space<vmem>>, vector<16x256xbf16>
    %1 = arith.extf %0 : vector<16x256xbf16> to vector<16x256xf32>
    %c0_1 = arith.constant 0 : index
    %c0_2 = arith.constant 0 : index
    %2 = vector.load %arg2[%c0_1, %c0_2] : memref<1x256xf32, #tpu.memory_space<vmem>>, vector<1x256xf32>
    %3 = vector.broadcast %2 : vector<1x256xf32> to vector<16x256xf32>
    %4 = arith.mulf %1, %3 : vector<16x256xf32>
    %c0_3 = arith.constant 0 : index
    %c0_4 = arith.constant 0 : index
    %5 = vector.load %arg3[%c0_3, %c0_4] : memref<1x256xf32, #tpu.memory_space<vmem>>, vector<1x256xf32>
    %6 = vector.broadcast %5 : vector<1x256xf32> to vector<16x256xf32>
    %7 = arith.addf %4, %6 : vector<16x256xf32>
    %cst = arith.constant 0.000000e+00 : f32
    %8 = vector.broadcast %cst : f32 to vector<16x256xf32>
    %9 = arith.cmpf oge, %7, %8 : vector<16x256xf32>
    %cst_5 = arith.constant 0.00999999977 : f32
    %10 = vector.broadcast %cst_5 : f32 to vector<16x256xf32>
    %11 = arith.mulf %10, %7 : vector<16x256xf32>
    %12 = arith.select %9, %7, %11 : vector<16x256xi1>, vector<16x256xf32>
    %13 = arith.truncf %12 : vector<16x256xf32> to vector<16x256xbf16>
    %c0_6 = arith.constant 0 : index
    %c0_7 = arith.constant 0 : index
    %14 = vector.load %arg4[%c0_6, %c0_7] : memref<256x512xbf16, #tpu.memory_space<vmem>>, vector<256x512xbf16>
    %cst_8 = arith.constant dense<0.000000e+00> : vector<16x512xf32>
    %15 = tpu.matmul %13, %14, %cst_8 {dimension_numbers = #tpu.dot_dimension_numbers<[1], [0], [0], [1], [0, 0, 1, 1], [], []>} : vector<16x256xbf16>, vector<256x512xbf16>, vector<16x512xf32> -> vector<16x512xf32>
    %c0_9 = arith.constant 0 : index
    %c0_10 = arith.constant 0 : index
    %16 = vector.load %arg5[%c0_9, %c0_10] : memref<1x512xf32, #tpu.memory_space<vmem>>, vector<1x512xf32>
    %17 = vector.broadcast %16 : vector<1x512xf32> to vector<16x512xf32>
    %18 = arith.addf %15, %17 : vector<16x512xf32>
    %19 = arith.truncf %18 : vector<16x512xf32> to vector<16x512xbf16>
    %c0_11 = arith.constant 0 : index
    %c0_12 = arith.constant 0 : index
    %20 = vector.load %arg6[%c0_11, %c0_12] : memref<16x512xbf16, #tpu.memory_space<vmem>>, vector<16x512xbf16>
    tpu.vector_store %arg6[%c0_11, %c0_12], %19 {strides = array<i32>} : memref<16x512xbf16, #tpu.memory_space<vmem>>, vector<16x512xbf16>,
    %c16_i32 = arith.constant 16 : i32
    %21 = arith.muli %arg0, %c16_i32 : i32
    %22 = tpu.iota {dimensions = array<i32: 0>} : vector<16x1xi32>
    %23 = vector.broadcast %21 : i32 to vector<16x1xi32>
    %24 = arith.addi %23, %22 : vector<16x1xi32>
    %c8_i32 = arith.constant 8 : i32
    %25 = vector.broadcast %c8_i32 : i32 to vector<16x1xi32>
    %26 = arith.cmpi slt, %24, %25 : vector<16x1xi32>
    %cst_13 = arith.constant 0.000000e+00 : f32
    %27 = vector.shape_cast %26 : vector<16x1xi1> to vector<16x1xi1>
    %28 = vector.broadcast %27 : vector<16x1xi1> to vector<16x512xi1>
    %29 = vector.broadcast %cst_13 : f32 to vector<16x512xf32>
    %30 = arith.select %28, %18, %29 : vector<16x512xi1>, vector<16x512xf32>
    %cst_14 = arith.constant dense<0.000000e+00> : vector<512xf32>
    %31 = vector.multi_reduction <add>, %30, %cst_14 [0] : vector<16x512xf32> to vector<512xf32>
    %32 = vector.shape_cast %31 : vector<512xf32> to vector<1x512xf32>
    %33 = arith.mulf %30, %30 : vector<16x512xf32>
    %cst_15 = arith.constant dense<0.000000e+00> : vector<512xf32>
    %34 = vector.multi_reduction <add>, %33, %cst_15 [0] : vector<16x512xf32> to vector<512xf32>
    %35 = vector.shape_cast %34 : vector<512xf32> to vector<1x512xf32>
    %36 = tpu.concatenate %32, %35 in 0 : vector<1x512xf32>, vector<1x512xf32> -> vector<2x512xf32>
    %37 = vector.shape_cast %36 : vector<2x512xf32> to vector<1x2x512xf32>
    %c0_16 = arith.constant 0 : index
    %c0_17 = arith.constant 0 : index
    %c0_18 = arith.constant 0 : index
    %38 = vector.load %arg7[%c0_16, %c0_17, %c0_18] : memref<1x2x512xf32, #tpu.memory_space<vmem>>, vector<1x2x512xf32>
    tpu.vector_store %arg7[%c0_16, %c0_17, %c0_18], %37 {strides = array<i32>} : memref<1x2x512xf32, #tpu.memory_space<vmem>>, vector<1x2x512xf32>,
    return
  }
  func.func @transform_0(%arg0: i32) -> (i32, i32) {
    %c0_i32 = arith.constant 0 : i32
    %c0_i32_0 = arith.constant 0 : i32
    return %arg0, %c0_i32 : i32, i32
  }
  func.func @transform_1(%arg0: i32) -> (i32, i32) {
    %c0_i32 = arith.constant 0 : i32
    %c0_i32_0 = arith.constant 0 : i32
    %c0_i32_1 = arith.constant 0 : i32
    return %c0_i32, %c0_i32_0 : i32, i32
  }
  func.func @transform_2(%arg0: i32) -> (i32, i32) {
    %c0_i32 = arith.constant 0 : i32
    %c0_i32_0 = arith.constant 0 : i32
    %c0_i32_1 = arith.constant 0 : i32
    return %c0_i32, %c0_i32_0 : i32, i32
  }
  func.func @transform_3(%arg0: i32) -> (i32, i32) {
    %c0_i32 = arith.constant 0 : i32
    %c0_i32_0 = arith.constant 0 : i32
    %c0_i32_1 = arith.constant 0 : i32
    return %c0_i32, %c0_i32_0 : i32, i32
  }
  func.func @transform_4(%arg0: i32) -> (i32, i32) {
    %c0_i32 = arith.constant 0 : i32
    %c0_i32_0 = arith.constant 0 : i32
    %c0_i32_1 = arith.constant 0 : i32
    return %c0_i32, %c0_i32_0 : i32, i32
  }
  func.func @transform_5(%arg0: i32) -> (i32, i32) {
    %c0_i32 = arith.constant 0 : i32
    %c0_i32_0 = arith.constant 0 : i32
    return %arg0, %c0_i32 : i32, i32
  }
  func.func @transform_6(%arg0: i32) -> (i32, i32, i32) {
    %c0_i32 = arith.constant 0 : i32
    %c0_i32_0 = arith.constant 0 : i32
    %c0_i32_1 = arith.constant 0 : i32
    return %arg0, %c0_i32, %c0_i32_0 : i32, i32, i32
  }
}

module attributes {stable_mosaic.version = 11 : i64} {
  func.func @_head_kernel(%arg0: i32, %arg1: memref<16x512xbf16, #tpu.memory_space<vmem>>, %arg2: memref<1x512xf32, #tpu.memory_space<vmem>>, %arg3: memref<1x512xf32, #tpu.memory_space<vmem>>, %arg4: memref<1x512xf32, #tpu.memory_space<vmem>>, %arg5: memref<1x1xf32, #tpu.memory_space<vmem>>, %arg6: memref<16x1xf32, #tpu.memory_space<vmem>>) attributes {dimension_semantics = [#tpu.dimension_semantics<parallel>], iteration_bounds = array<i64: 1>, scalar_prefetch = 0 : i64, scratch_operands = 0 : i64, tpu.core_type = #tpu.core_type<tc>, window_params = [{transform_indices = @transform_0, window_bounds = array<i64: 16, 512>}, {pipeline_mode = #tpu.pipeline_mode<synchronous>, transform_indices = @transform_1, window_bounds = array<i64: 1, 512>}, {pipeline_mode = #tpu.pipeline_mode<synchronous>, transform_indices = @transform_2, window_bounds = array<i64: 1, 512>}, {pipeline_mode = #tpu.pipeline_mode<synchronous>, transform_indices = @transform_3, window_bounds = array<i64: 1, 512>}, {pipeline_mode = #tpu.pipeline_mode<synchronous>, transform_indices = @transform_4, window_bounds = array<i64: 1, 1>}, {transform_indices = @transform_5, window_bounds = array<i64: 16, 1>}]} {
    %c0 = arith.constant 0 : index
    %c0_0 = arith.constant 0 : index
    %0 = vector.load %arg1[%c0, %c0_0] : memref<16x512xbf16, #tpu.memory_space<vmem>>, vector<16x512xbf16>
    %1 = arith.extf %0 : vector<16x512xbf16> to vector<16x512xf32>
    %c0_1 = arith.constant 0 : index
    %c0_2 = arith.constant 0 : index
    %2 = vector.load %arg2[%c0_1, %c0_2] : memref<1x512xf32, #tpu.memory_space<vmem>>, vector<1x512xf32>
    %3 = vector.broadcast %2 : vector<1x512xf32> to vector<16x512xf32>
    %4 = arith.mulf %1, %3 : vector<16x512xf32>
    %c0_3 = arith.constant 0 : index
    %c0_4 = arith.constant 0 : index
    %5 = vector.load %arg3[%c0_3, %c0_4] : memref<1x512xf32, #tpu.memory_space<vmem>>, vector<1x512xf32>
    %6 = vector.broadcast %5 : vector<1x512xf32> to vector<16x512xf32>
    %7 = arith.addf %4, %6 : vector<16x512xf32>
    %cst = arith.constant 0.000000e+00 : f32
    %8 = vector.broadcast %cst : f32 to vector<16x512xf32>
    %9 = arith.cmpf oge, %7, %8 : vector<16x512xf32>
    %cst_5 = arith.constant 0.00999999977 : f32
    %10 = vector.broadcast %cst_5 : f32 to vector<16x512xf32>
    %11 = arith.mulf %10, %7 : vector<16x512xf32>
    %12 = arith.select %9, %7, %11 : vector<16x512xi1>, vector<16x512xf32>
    %c0_6 = arith.constant 0 : index
    %c0_7 = arith.constant 0 : index
    %13 = vector.load %arg4[%c0_6, %c0_7] : memref<1x512xf32, #tpu.memory_space<vmem>>, vector<1x512xf32>
    %14 = vector.broadcast %13 : vector<1x512xf32> to vector<16x512xf32>
    %15 = arith.mulf %12, %14 : vector<16x512xf32>
    %cst_8 = arith.constant dense<0.000000e+00> : vector<16xf32>
    %16 = vector.multi_reduction <add>, %15, %cst_8 [1] : vector<16x512xf32> to vector<16xf32>
    %17 = vector.shape_cast %16 : vector<16xf32> to vector<16x1xf32>
    %c0_9 = arith.constant 0 : index
    %c0_10 = arith.constant 0 : index
    %18 = vector.load %arg5[%c0_9, %c0_10] : memref<1x1xf32, #tpu.memory_space<vmem>>, vector<1x1xf32>
    %19 = vector.broadcast %18 : vector<1x1xf32> to vector<16x1xf32>
    %20 = arith.addf %17, %19 : vector<16x1xf32>
    %cst_11 = arith.constant 0.000000e+00 : f32
    %21 = vector.broadcast %cst_11 : f32 to vector<16x1xf32>
    %22 = arith.subf %21, %20 : vector<16x1xf32>
    %23 = math.exp %22 : vector<16x1xf32>
    %cst_12 = arith.constant 1.000000e+00 : f32
    %24 = vector.broadcast %cst_12 : f32 to vector<16x1xf32>
    %25 = arith.addf %24, %23 : vector<16x1xf32>
    %cst_13 = arith.constant 1.000000e+00 : f32
    %26 = vector.broadcast %cst_13 : f32 to vector<16x1xf32>
    %27 = arith.divf %26, %25 : vector<16x1xf32>
    %c0_14 = arith.constant 0 : index
    %c0_15 = arith.constant 0 : index
    %28 = vector.load %arg6[%c0_14, %c0_15] : memref<16x1xf32, #tpu.memory_space<vmem>>, vector<16x1xf32>
    tpu.vector_store %arg6[%c0_14, %c0_15], %27 {strides = array<i32>} : memref<16x1xf32, #tpu.memory_space<vmem>>, vector<16x1xf32>,
    return
  }
  func.func @transform_0(%arg0: i32) -> (i32, i32) {
    %c0_i32 = arith.constant 0 : i32
    %c0_i32_0 = arith.constant 0 : i32
    return %arg0, %c0_i32 : i32, i32
  }
  func.func @transform_1(%arg0: i32) -> (i32, i32) {
    %c0_i32 = arith.constant 0 : i32
    %c0_i32_0 = arith.constant 0 : i32
    %c0_i32_1 = arith.constant 0 : i32
    return %c0_i32, %c0_i32_0 : i32, i32
  }
  func.func @transform_2(%arg0: i32) -> (i32, i32) {
    %c0_i32 = arith.constant 0 : i32
    %c0_i32_0 = arith.constant 0 : i32
    %c0_i32_1 = arith.constant 0 : i32
    return %c0_i32, %c0_i32_0 : i32, i32
  }
  func.func @transform_3(%arg0: i32) -> (i32, i32) {
    %c0_i32 = arith.constant 0 : i32
    %c0_i32_0 = arith.constant 0 : i32
    %c0_i32_1 = arith.constant 0 : i32
    return %c0_i32, %c0_i32_0 : i32, i32
  }
  func.func @transform_4(%arg0: i32) -> (i32, i32) {
    %c0_i32 = arith.constant 0 : i32
    %c0_i32_0 = arith.constant 0 : i32
    %c0_i32_1 = arith.constant 0 : i32
    return %c0_i32, %c0_i32_0 : i32, i32
  }
  func.func @transform_5(%arg0: i32) -> (i32, i32) {
    %c0_i32 = arith.constant 0 : i32
    %c0_i32_0 = arith.constant 0 : i32
    return %arg0, %c0_i32 : i32, i32
  }
}

</mosaic_0001>

<llo_original>
// kernel: discriminator_forward.5
$region0: #{discriminator_forward.5}
  #allocation0 [shape = 'u32[]', space=smem, size = 0x4, offset = 0x4, fixed_abs, tag = 'smem constant byte address 0x4 - core index']
  #allocation1 [shape = 'u32[144,128]{1,0:T(1,128)}', space=vmem, size = 0x12000, scoped, tag = 'internal scratch']
  %s0 = inlined_call_operand.vmem [shape: bf16[112,64], index: 0, kind: input, shape index: {}]
  %s1 = inlined_call_operand.vmem [shape: bf16[64,64], index: 1, kind: input, shape index: {}]
  %s2 = inlined_call_operand.vmem [shape: f32[1,64], index: 2, kind: input, shape index: {}]
  %s3 = inlined_call_operand.vmem [shape: bf16[112,64], index: 3, kind: output, shape index: {0}]
  %s4 = inlined_call_operand.vmem [shape: f32[1,2,64], index: 4, kind: output, shape index: {1}]
  %5 = xla_tuple %s3, %s4
  %s6 = sld [smem:[#allocation0]]
  $region30: #{discriminator_forward.5} parent=0
    _
  %s8 = ssub.s32 1, %s6
  %s9 = scalar_select 0, %s8, %s6
  // Predicated region
  $region2: #{discriminator_forward.5} parent=0 // pred_check
    _
  $region3: #{discriminator_forward.5} parent=0 // pred_check_branch
    %11 = sbr.rel (0) target = $region5
  $region4: #{discriminator_forward.5} parent=0 // pred_region
    _
  $region5: #{discriminator_forward.5} parent=0 // pred_fallthru
    _
  // Predicated region
  $region6: #{discriminator_forward.5} parent=0 // pred_check
    _
  $region7: #{discriminator_forward.5} parent=0 // pred_check_branch
    %13 = sbr.rel (0) target = $region9
  $region8: #{discriminator_forward.5} parent=0 // pred_region
    _
  $region9: #{discriminator_forward.5} parent=0 // pred_fallthru
    _
  // Predicated region
  $region10: #{discriminator_forward.5} parent=0 // pred_check
    _
  $region11: #{discriminator_forward.5} parent=0 // pred_check_branch
    %15 = sbr.rel (0) target = $region13
  $region12: #{discriminator_forward.5} parent=0 // pred_region
    _
  $region13: #{discriminator_forward.5} parent=0 // pred_fallthru
    _
  %v17 = vld [vmem:[%s0] sm:$0xf]
  %v18 = vld [vmem:[%s0 + $0x4] sm:$0xf]
  %v19 = vld [vmem:[%s0 + $0x8] sm:$0xf]
  %v20 = vld [vmem:[%s0 + $0xc] sm:$0xf]
  %v21 = vld [vmem:[%s0 + $0x10] sm:$0xf]
  %v22 = vld [vmem:[%s0 + $0x14] sm:$0xf]
  %v23 = vld [vmem:[%s0 + $0x18] sm:$0xf]
  %v24 = vld [vmem:[%s0 + $0x1c] sm:$0xf]
  %v25 = vld [vmem:[%s0 + $0x20] sm:$0xf]
  %v26 = vld [vmem:[%s0 + $0x24] sm:$0xf]
  %v27 = vld [vmem:[%s0 + $0x28] sm:$0xf]
  %v28 = vld [vmem:[%s0 + $0x2c] sm:$0xf]
  %v29 = vld [vmem:[%s0 + $0x30] sm:$0xf]
  %v30 = vld [vmem:[%s0 + $0x34] sm:$0xf]
  %v31 = vld [vmem:[%s1] sm:$0xf]
  %v32 = vld [vmem:[%s1 + $0x4] sm:$0xf]
  %v33 = vld [vmem:[%s1 + $0x8] sm:$0xf]
  %v34 = vld [vmem:[%s1 + $0xc] sm:$0xf]
  %v35 = vld [vmem:[%s1 + $0x10] sm:$0xf]
  %v36 = vld [vmem:[%s1 + $0x14] sm:$0xf]
  %v37 = vld [vmem:[%s1 + $0x18] sm:$0xf]
  %v38 = vld [vmem:[%s1 + $0x1c] sm:$0xf]
  %v39 = vld [vmem:[%s2] sm:$0x1]
  %v41 = vlaneseq
  %v42 = vshrl.u32 %v41, 7
  %v43 = vsub.s32 0, %v42
  %v44 = vrot.slane %v39, %v43
  %v60 = vunpack.c.l.b16 %v17
  %v61 = vunpack.c.l.b16 %v18
  %v62 = vunpack.c.l.b16 %v19
  %v63 = vunpack.c.l.b16 %v20
  %v64 = vunpack.c.l.b16 %v21
  %v65 = vunpack.c.l.b16 %v22
  %v66 = vunpack.c.l.b16 %v23
  %v67 = vunpack.c.l.b16 %v24
  %v68 = vunpack.c.l.b16 %v25
  %v69 = vunpack.c.l.b16 %v26
  %v70 = vunpack.c.l.b16 %v27
  %v71 = vunpack.c.l.b16 %v28
  %v72 = vunpack.c.l.b16 %v29
  %v73 = vunpack.c.l.b16 %v30
  %v74 = vpack.c.b16 %v61, %v60
  %v75 = vpack.c.b16 %v63, %v62
  %v76 = vpack.c.b16 %v65, %v64
  %v77 = vpack.c.b16 %v67, %v66
  %v78 = vpack.c.b16 %v69, %v68
  %v79 = vpack.c.b16 %v71, %v70
  %v80 = vpack.c.b16 %v73, %v72
  %v89 = vunpack.c.l.b16 %v31
  %v90 = vunpack.c.l.b16 %v32
  %v91 = vunpack.c.l.b16 %v33
  %v92 = vunpack.c.l.b16 %v34
  %v93 = vunpack.c.l.b16 %v35
  %v94 = vunpack.c.l.b16 %v36
  %v95 = vunpack.c.l.b16 %v37
  %v96 = vunpack.c.l.b16 %v38
  %v97 = vpack.c.b16 %v90, %v89
  %v98 = vpack.c.b16 %v92, %v91
  %v99 = vpack.c.b16 %v94, %v93
  %v100 = vpack.c.b16 %v96, %v95
  %vm105 = vcmask 523264
  %v107 = vsel %vm105, %v74, 0
  %v110 = vsel %vm105, %v75, 0
  %v113 = vsel %vm105, %v76, 0
  %v116 = vsel %vm105, %v77, 0
  %v119 = vsel %vm105, %v78, 0
  %v122 = vsel %vm105, %v79, 0
  %v125 = vsel %vm105, %v80, 0
  %127 = vmatprep.subr.bf16.mxu0 0
  %128 = vmatpush1.bf16.msra.mxu0 %v97
  %129 = vmatprep.subr.bf16.mxu0 0
  %130 = vmatpush1.bf16.msra.mxu0 %v98
  %131 = vmatprep.subr.bf16.mxu0 0
  %132 = vmatpush1.bf16.msra.mxu0 %v99
  %133 = vmatprep.subr.bf16.mxu0 0
  %134 = vmatpush1.bf16.msra.mxu0 %v100
  %135 = vmatprep.subr.bf16.mxu0 0
  %136 = vmatpush1.bf16.msra.mxu0 0
  %137 = vmatprep.subr.bf16.mxu0 0
  %138 = vmatpush1.bf16.msra.mxu0 0
  %139 = vmatprep.subr.bf16.mxu0 0
  %140 = vmatpush1.bf16.msra.mxu0 0
  %141 = vmatprep.subr.bf16.mxu0 0
  %142 = vmatpush1.bf16.msra.mxu0 0
  %143 = vmatprep.subr.bf16.mxu0 0
  %144 = vmatpush1.bf16.msra.mxu0 0
  %145 = vmatprep.subr.bf16.mxu0 0
  %146 = vmatpush1.bf16.msra.mxu0 0
  %147 = vmatprep.subr.bf16.mxu0 0
  %148 = vmatpush1.bf16.msra.mxu0 0
  %149 = vmatprep.subr.bf16.mxu0 0
  %150 = vmatpush1.bf16.msra.mxu0 0
  %151 = vmatprep.subr.bf16.mxu0 0
  %152 = vmatpush1.bf16.msra.mxu0 0
  %153 = vmatprep.subr.bf16.mxu0 0
  %154 = vmatpush1.bf16.msra.mxu0 0
  %155 = vmatprep.subr.bf16.mxu0 0
  %156 = vmatpush1.bf16.msra.mxu0 0
  %157 = vmatprep.subr.bf16.mxu0 0
  %158 = vmatpush1.bf16.msra.mxu0 0
  %159 = vmatprep.mubr.bf16.mxu0 0
  %160 = vmatmul.mubr.bf16.gmra.mrb[0].mxu0 %v107
  %v161 = vpop.f32.mrb[0].mxu0
  %v162 = vadd.f32 %v44, %v161
  %v163 = vpop.f32.mrb[0].mxu0
  %v164 = vpop.f32.mrb[0].mxu0
  %v165 = vadd.f32 %v44, %v164
  %v166 = vpop.f32.mrb[0].mxu0
  %167 = vmatprep.mubr.bf16.mxu0 0
  %168 = vmatmul.mubr.bf16.gmra.mrb[0].mxu0 %v110
  %v169 = vpop.f32.mrb[0].mxu0
  %v170 = vadd.f32 %v44, %v169
  %v171 = vpop.f32.mrb[0].mxu0
  %v172 = vpop.f32.mrb[0].mxu0
  %v173 = vadd.f32 %v44, %v172
  %v174 = vpop.f32.mrb[0].mxu0
  %175 = vmatprep.mubr.bf16.mxu0 0
  %176 = vmatmul.mubr.bf16.gmra.mrb[0].mxu0 %v113
  %v177 = vpop.f32.mrb[0].mxu0
  %v178 = vadd.f32 %v44, %v177
  %v179 = vpop.f32.mrb[0].mxu0
  %v180 = vpop.f32.mrb[0].mxu0
  %v181 = vadd.f32 %v44, %v180
  %v182 = vpop.f32.mrb[0].mxu0
  %183 = vmatprep.mubr.bf16.mxu0 0
  %184 = vmatmul.mubr.bf16.gmra.mrb[0].mxu0 %v116
  %v185 = vpop.f32.mrb[0].mxu0
  %v186 = vadd.f32 %v44, %v185
  %v187 = vpop.f32.mrb[0].mxu0
  %v188 = vpop.f32.mrb[0].mxu0
  %v189 = vadd.f32 %v44, %v188
  %v190 = vpop.f32.mrb[0].mxu0
  %191 = vmatprep.mubr.bf16.mxu0 0
  %192 = vmatmul.mubr.bf16.gmra.mrb[0].mxu0 %v119
  %v193 = vpop.f32.mrb[0].mxu0
  %v194 = vadd.f32 %v44, %v193
  %v195 = vpop.f32.mrb[0].mxu0
  %v196 = vpop.f32.mrb[0].mxu0
  %v197 = vadd.f32 %v44, %v196
  %v198 = vpop.f32.mrb[0].mxu0
  %199 = vmatprep.mubr.bf16.mxu0 0
  %200 = vmatmul.mubr.bf16.gmra.mrb[0].mxu0 %v122
  %v201 = vpop.f32.mrb[0].mxu0
  %v202 = vadd.f32 %v44, %v201
  %v203 = vpop.f32.mrb[0].mxu0
  %v204 = vpop.f32.mrb[0].mxu0
  %v205 = vadd.f32 %v44, %v204
  %v206 = vpop.f32.mrb[0].mxu0
  %207 = vmatprep.mubr.bf16.mxu0 0
  %208 = vmatmul.mubr.bf16.gmra.mrb[0].mxu0 %v125
  %v209 = vpop.f32.mrb[0].mxu0
  %v210 = vadd.f32 %v44, %v209
  %v211 = vpop.f32.mrb[0].mxu0
  %v212 = vpop.f32.mrb[0].mxu0
  %v213 = vadd.f32 %v44, %v212
  %v214 = vpop.f32.mrb[0].mxu0
  %215 = vdwg.mxu0
  %v216 = vpack.c.bf16 %v165, %v162
  %v217 = vpack.c.bf16 %v173, %v170
  %v218 = vpack.c.bf16 %v181, %v178
  %v219 = vpack.c.bf16 %v189, %v186
  %v220 = vpack.c.bf16 %v197, %v194
  %v221 = vpack.c.bf16 %v205, %v202
  %v222 = vpack.c.bf16 %v213, %v210
  %v230 = vunpack.c.l.b16 %v216
  %v231 = vunpack.c.h.b16 %v216
  %v232 = vunpack.c.l.b16 %v217
  %v233 = vunpack.c.h.b16 %v217
  %v234 = vunpack.c.l.b16 %v218
  %v235 = vunpack.c.h.b16 %v218
  %v236 = vunpack.c.l.b16 %v219
  %v237 = vunpack.c.h.b16 %v219
  %v238 = vunpack.c.l.b16 %v220
  %v239 = vunpack.c.h.b16 %v220
  %v240 = vunpack.c.l.b16 %v221
  %v241 = vunpack.c.h.b16 %v221
  %v242 = vunpack.c.l.b16 %v222
  %v243 = vunpack.c.h.b16 %v222
  %v244 = vpack.c.b16 %v230, %v230
  %v245 = vpack.c.b16 %v231, %v231
  %v246 = vpack.c.b16 %v232, %v232
  %v247 = vpack.c.b16 %v233, %v233
  %v248 = vpack.c.b16 %v234, %v234
  %v249 = vpack.c.b16 %v235, %v235
  %v250 = vpack.c.b16 %v236, %v236
  %v251 = vpack.c.b16 %v237, %v237
  %v252 = vpack.c.b16 %v238, %v238
  %v253 = vpack.c.b16 %v239, %v239
  %v254 = vpack.c.b16 %v240, %v240
  %v255 = vpack.c.b16 %v241, %v241
  %v256 = vpack.c.b16 %v242, %v242
  %v257 = vpack.c.b16 %v243, %v243
  %vm272 = vcmask 519168
  %273 = vst.msk [vmem:[%s3] sm:$0xf] %vm272, %v244
  %274 = vst.msk [vmem:[%s3 + $0x4] sm:$0xf] %vm272, %v245
  %275 = vst.msk [vmem:[%s3 + $0x8] sm:$0xf] %vm272, %v246
  %276 = vst.msk [vmem:[%s3 + $0xc] sm:$0xf] %vm272, %v247
  %277 = vst.msk [vmem:[%s3 + $0x10] sm:$0xf] %vm272, %v248
  %278 = vst.msk [vmem:[%s3 + $0x14] sm:$0xf] %vm272, %v249
  %279 = vst.msk [vmem:[%s3 + $0x18] sm:$0xf] %vm272, %v250
  %280 = vst.msk [vmem:[%s3 + $0x1c] sm:$0xf] %vm272, %v251
  %281 = vst.msk [vmem:[%s3 + $0x20] sm:$0xf] %vm272, %v252
  %282 = vst.msk [vmem:[%s3 + $0x24] sm:$0xf] %vm272, %v253
  %283 = vst.msk [vmem:[%s3 + $0x28] sm:$0xf] %vm272, %v254
  %284 = vst.msk [vmem:[%s3 + $0x2c] sm:$0xf] %vm272, %v255
  %285 = vst.msk [vmem:[%s3 + $0x30] sm:$0xf] %vm272, %v256
  %286 = vst.msk [vmem:[%s3 + $0x34] sm:$0xf] %vm272, %v257
  %s287 = smul.u32 0, 112
  %v288 = vlaneseq
  %v289 = vshrl.u32 %v288, 7
  %v290 = vadd.s32 %v289, 8
  %v291 = vadd.s32 %v289, 16
  %v292 = vadd.s32 %v289, 24
  %v293 = vadd.s32 %v289, 32
  %v294 = vadd.s32 %v289, 40
  %v295 = vadd.s32 %v289, 48
  %v296 = vadd.s32 %v289, 56
  %v297 = vadd.s32 %v289, 64
  %v298 = vadd.s32 %v289, 72
  %v299 = vadd.s32 %v289, 80
  %v300 = vadd.s32 %v289, 88
  %v301 = vadd.s32 %v289, 96
  %v302 = vadd.s32 %v289, 104
  %v303 = vstv %s287
  %v304 = vadd.s32 %v303, %v289
  %v305 = vadd.s32 %v303, %v290
  %v306 = vadd.s32 %v303, %v291
  %v307 = vadd.s32 %v303, %v292
  %v308 = vadd.s32 %v303, %v293
  %v309 = vadd.s32 %v303, %v294
  %v310 = vadd.s32 %v303, %v295
  %v311 = vadd.s32 %v303, %v296
  %v312 = vadd.s32 %v303, %v297
  %v313 = vadd.s32 %v303, %v298
  %v314 = vadd.s32 %v303, %v299
  %v315 = vadd.s32 %v303, %v300
  %v316 = vadd.s32 %v303, %v301
  %v317 = vadd.s32 %v303, %v302
  %vm318 = vcmp.lt.s32.totalorder %v304, 98
  %vm319 = vcmp.lt.s32.totalorder %v305, 98
  %vm320 = vcmp.lt.s32.totalorder %v306, 98
  %vm321 = vcmp.lt.s32.totalorder %v307, 98
  %vm322 = vcmp.lt.s32.totalorder %v308, 98
  %vm323 = vcmp.lt.s32.totalorder %v309, 98
  %vm324 = vcmp.lt.s32.totalorder %v310, 98
  %vm325 = vcmp.lt.s32.totalorder %v311, 98
  %vm326 = vcmp.lt.s32.totalorder %v312, 98
  %vm327 = vcmp.lt.s32.totalorder %v313, 98
  %vm328 = vcmp.lt.s32.totalorder %v314, 98
  %vm329 = vcmp.lt.s32.totalorder %v315, 98
  %vm330 = vcmp.lt.s32.totalorder %v316, 98
  %vm331 = vcmp.lt.s32.totalorder %v317, 98
  %v332 = vsel %vm318, 1, 0
  %v333 = vsel %vm319, 1, 0
  %v334 = vsel %vm320, 1, 0
  %v335 = vsel %vm321, 1, 0
  %v336 = vsel %vm322, 1, 0
  %v337 = vsel %vm323, 1, 0
  %v338 = vsel %vm324, 1, 0
  %v339 = vsel %vm325, 1, 0
  %v340 = vsel %vm326, 1, 0
  %v341 = vsel %vm327, 1, 0
  %v342 = vsel %vm328, 1, 0
  %v343 = vsel %vm329, 1, 0
  %v344 = vsel %vm330, 1, 0
  %v345 = vsel %vm331, 1, 0
  %vm346 = vcmp.eq.s32.totalorder %v332, 1
  %vm347 = vcmp.eq.s32.totalorder %v333, 1
  %vm348 = vcmp.eq.s32.totalorder %v334, 1
  %vm349 = vcmp.eq.s32.totalorder %v335, 1
  %vm350 = vcmp.eq.s32.totalorder %v336, 1
  %vm351 = vcmp.eq.s32.totalorder %v337, 1
  %vm352 = vcmp.eq.s32.totalorder %v338, 1
  %vm353 = vcmp.eq.s32.totalorder %v339, 1
  %vm354 = vcmp.eq.s32.totalorder %v340, 1
  %vm355 = vcmp.eq.s32.totalorder %v341, 1
  %vm356 = vcmp.eq.s32.totalorder %v342, 1
  %vm357 = vcmp.eq.s32.totalorder %v343, 1
  %vm358 = vcmp.eq.s32.totalorder %v344, 1
  %vm359 = vcmp.eq.s32.totalorder %v345, 1
  %v360 = vsel %vm346, %v162, 0.0
  %v361 = vsel %vm347, %v165, 0.0
  %v362 = vsel %vm348, %v170, 0.0
  %v363 = vsel %vm349, %v173, 0.0
  %v364 = vsel %vm350, %v178, 0.0
  %v365 = vsel %vm351, %v181, 0.0
  %v366 = vsel %vm352, %v186, 0.0
  %v367 = vsel %vm353, %v189, 0.0
  %v368 = vsel %vm354, %v194, 0.0
  %v369 = vsel %vm355, %v197, 0.0
  %v370 = vsel %vm356, %v202, 0.0
  %v371 = vsel %vm357, %v205, 0.0
  %v372 = vsel %vm358, %v210, 0.0
  %v373 = vsel %vm359, %v213, 0.0
  %v374 = vsel %vm105, %v360, 0.0
  %v375 = vsel %vm105, %v361, 0.0
  %v376 = vadd.f32 %v374, %v375
  %v377 = vsel %vm105, %v362, 0.0
  %v378 = vadd.f32 %v376, %v377
  %v379 = vsel %vm105, %v363, 0.0
  %v380 = vadd.f32 %v378, %v379
  %v381 = vsel %vm105, %v364, 0.0
  %v382 = vadd.f32 %v380, %v381
  %v383 = vsel %vm105, %v365, 0.0
  %v384 = vadd.f32 %v382, %v383
  %v385 = vsel %vm105, %v366, 0.0
  %v386 = vadd.f32 %v384, %v385
  %v387 = vsel %vm105, %v367, 0.0
  %v388 = vadd.f32 %v386, %v387
  %v389 = vsel %vm105, %v368, 0.0
  %v390 = vadd.f32 %v388, %v389
  %v391 = vsel %vm105, %v369, 0.0
  %v392 = vadd.f32 %v390, %v391
  %v393 = vsel %vm105, %v370, 0.0
  %v394 = vadd.f32 %v392, %v393
  %v395 = vsel %vm105, %v371, 0.0
  %v396 = vadd.f32 %v394, %v395
  %v397 = vsel %vm105, %v372, 0.0
  %v398 = vadd.f32 %v396, %v397
  %v399 = vsel %vm105, %v373, 0.0
  %v400 = vadd.f32 %v398, %v399
  %v401 = vrot.slane %v400, 4
  %v402 = vadd.f32 %v400, %v401
  %v403 = vrot.slane %v402, 2
  %v404 = vadd.f32 %v402, %v403
  %v405 = vrot.slane %v404, 1
  %v406 = vadd.f32 %v404, %v405
  %v407 = vmul.f32 %v360, %v360
  %v408 = vmul.f32 %v361, %v361
  %v409 = vmul.f32 %v362, %v362
  %v410 = vmul.f32 %v363, %v363
  %v411 = vmul.f32 %v364, %v364
  %v412 = vmul.f32 %v365, %v365
  %v413 = vmul.f32 %v366, %v366
  %v414 = vmul.f32 %v367, %v367
  %v415 = vmul.f32 %v368, %v368
  %v416 = vmul.f32 %v369, %v369
  %v417 = vmul.f32 %v370, %v370
  %v418 = vmul.f32 %v371, %v371
  %v419 = vmul.f32 %v372, %v372
  %v420 = vmul.f32 %v373, %v373
  %v421 = vsel %vm105, %v407, 0.0
  %v422 = vsel %vm105, %v408, 0.0
  %v423 = vadd.f32 %v421, %v422
  %v424 = vsel %vm105, %v409, 0.0
  %v425 = vadd.f32 %v423, %v424
  %v426 = vsel %vm105, %v410, 0.0
  %v427 = vadd.f32 %v425, %v426
  %v428 = vsel %vm105, %v411, 0.0
  %v429 = vadd.f32 %v427, %v428
  %v430 = vsel %vm105, %v412, 0.0
  %v431 = vadd.f32 %v429, %v430
  %v432 = vsel %vm105, %v413, 0.0
  %v433 = vadd.f32 %v431, %v432
  %v434 = vsel %vm105, %v414, 0.0
  %v435 = vadd.f32 %v433, %v434
  %v436 = vsel %vm105, %v415, 0.0
  %v437 = vadd.f32 %v435, %v436
  %v438 = vsel %vm105, %v416, 0.0
  %v439 = vadd.f32 %v437, %v438
  %v440 = vsel %vm105, %v417, 0.0
  %v441 = vadd.f32 %v439, %v440
  %v442 = vsel %vm105, %v418, 0.0
  %v443 = vadd.f32 %v441, %v442
  %v444 = vsel %vm105, %v419, 0.0
  %v445 = vadd.f32 %v443, %v444
  %v446 = vsel %vm105, %v420, 0.0
  %v447 = vadd.f32 %v445, %v446
  %v448 = vrot.slane %v447, 4
  %v449 = vadd.f32 %v447, %v448
  %v450 = vrot.slane %v449, 2
  %v451 = vadd.f32 %v449, %v450
  %v452 = vrot.slane %v451, 1
  %v453 = vadd.f32 %v451, %v452
  %vm454 = vcmask 1040384
  %v455 = vsel %vm454, %v406, %v453
  %vm456 = vcmask 517120
  %457 = vst.msk [vmem:[%s4] sm:$0x3] %vm456, %v455
  // Predicated region
  $region14: #{discriminator_forward.5} parent=0 // pred_check
    _
  $region15: #{discriminator_forward.5} parent=0 // pred_check_branch
    %459 = sbr.rel (0) target = $region17
  $region16: #{discriminator_forward.5} parent=0 // pred_region
    _
  $region17: #{discriminator_forward.5} parent=0 // pred_fallthru
    _
  // Predicated region
  $region18: #{discriminator_forward.5} parent=0 // pred_check
    _
  $region19: #{discriminator_forward.5} parent=0 // pred_check_branch
    %461 = sbr.rel (0) target = $region21
  $region20: #{discriminator_forward.5} parent=0 // pred_region
    _
  $region21: #{discriminator_forward.5} parent=0 // pred_fallthru
    _
  // Predicated region
  $region22: #{discriminator_forward.5} parent=0 // pred_check
    _
  $region23: #{discriminator_forward.5} parent=0 // pred_check_branch
    %463 = sbr.rel (0) target = $region25
  $region24: #{discriminator_forward.5} parent=0 // pred_region
    _
  $region25: #{discriminator_forward.5} parent=0 // pred_fallthru
    _
  // Predicated region
  $region26: #{discriminator_forward.5} parent=0 // pred_check
    _
  $region27: #{discriminator_forward.5} parent=0 // pred_check_branch
    %465 = sbr.rel (0) target = $region29
  $region28: #{discriminator_forward.5} parent=0 // pred_region
    _
  $region29: #{discriminator_forward.5} parent=0 // pred_fallthru
    _

// kernel: discriminator_forward.7
$region0: #{discriminator_forward.7}
  #allocation0 [shape = 'u32[]', space=smem, size = 0x4, offset = 0x4, fixed_abs, tag = 'smem constant byte address 0x4 - core index']
  #allocation1 [shape = 'u32[144,128]{1,0:T(1,128)}', space=vmem, size = 0x12000, scoped, tag = 'internal scratch']
  %s0 = inlined_call_operand.vmem [shape: bf16[16,128], index: 0, kind: input, shape index: {}]
  %s1 = inlined_call_operand.vmem [shape: f32[1,128], index: 1, kind: input, shape index: {}]
  %s2 = inlined_call_operand.vmem [shape: f32[1,128], index: 2, kind: input, shape index: {}]
  %s3 = inlined_call_operand.vmem [shape: bf16[128,256], index: 3, kind: input, shape index: {}]
  %s4 = inlined_call_operand.vmem [shape: f32[1,256], index: 4, kind: input, shape index: {}]
  %s5 = inlined_call_operand.vmem [shape: bf16[16,256], index: 5, kind: output, shape index: {0}]
  %s6 = inlined_call_operand.vmem [shape: f32[1,2,256], index: 6, kind: output, shape index: {1}]
  %7 = xla_tuple %s5, %s6
  %s8 = sld [smem:[#allocation0]]
  $region38: #{discriminator_forward.7} parent=0
    _
  %s10 = ssub.s32 1, %s8
  %s11 = scalar_select 0, %s10, %s8
  // Predicated region
  $region2: #{discriminator_forward.7} parent=0 // pred_check
    _
  $region3: #{discriminator_forward.7} parent=0 // pred_check_branch
    %13 = sbr.rel (0) target = $region5
  $region4: #{discriminator_forward.7} parent=0 // pred_region
    _
  $region5: #{discriminator_forward.7} parent=0 // pred_fallthru
    _
  // Predicated region
  $region6: #{discriminator_forward.7} parent=0 // pred_check
    _
  $region7: #{discriminator_forward.7} parent=0 // pred_check_branch
    %15 = sbr.rel (0) target = $region9
  $region8: #{discriminator_forward.7} parent=0 // pred_region
    _
  $region9: #{discriminator_forward.7} parent=0 // pred_fallthru
    _
  // Predicated region
  $region10: #{discriminator_forward.7} parent=0 // pred_check
    _
  $region11: #{discriminator_forward.7} parent=0 // pred_check_branch
    %17 = sbr.rel (0) target = $region13
  $region12: #{discriminator_forward.7} parent=0 // pred_region
    _
  $region13: #{discriminator_forward.7} parent=0 // pred_fallthru
    _
  // Predicated region
  $region14: #{discriminator_forward.7} parent=0 // pred_check
    _
  $region15: #{discriminator_forward.7} parent=0 // pred_check_branch
    %19 = sbr.rel (0) target = $region17
  $region16: #{discriminator_forward.7} parent=0 // pred_region
    _
  $region17: #{discriminator_forward.7} parent=0 // pred_fallthru
    _
  // Predicated region
  $region18: #{discriminator_forward.7} parent=0 // pred_check
    _
  $region19: #{discriminator_forward.7} parent=0 // pred_check_branch
    %21 = sbr.rel (0) target = $region21
  $region20: #{discriminator_forward.7} parent=0 // pred_region
    _
  $region21: #{discriminator_forward.7} parent=0 // pred_fallthru
    _
  %v23 = vld [vmem:[%s0] sm:$0xf]
  %v24 = vld [vmem:[%s0 + $0x4] sm:$0xf]
  %v25 = vunpack.c.l.bf16 %v23
  %v26 = vunpack.c.l.bf16 %v24
  %v27 = vld [vmem:[%s1] sm:$0x1]
  %v29 = vlaneseq
  %v30 = vshrl.u32 %v29, 7
  %v31 = vsub.s32 0, %v30
  %v32 = vrot.slane %v27, %v31
  %v34 = vmul.f32 %v25, %v32
  %v35 = vmul.f32 %v26, %v32
  %v36 = vld [vmem:[%s2] sm:$0x1]
  %v38 = vlaneseq
  %v39 = vshrl.u32 %v38, 7
  %v40 = vsub.s32 0, %v39
  %v41 = vrot.slane %v36, %v40
  %v43 = vadd.f32 %v34, %v41
  %v44 = vadd.f32 %v35, %v41
  %vm45 = vcmp.ge.f32.partialorder %v43, 0.0
  %vm46 = vcmp.ge.f32.partialorder %v44, 0.0
  %v47 = vmul.f32 %v43, 0.01
  %v48 = vmul.f32 %v44, 0.01
  %v49 = vsel %vm45, %v43, %v47
  %v50 = vsel %vm46, %v44, %v48
  %v51 = vpack.c.bf16 %v50, %v49
  %v52 = vld [vmem:[%s3] sm:$0xff]
  %v53 = vld [vmem:[%s3 + $0x8] sm:$0xff]
  %v54 = vld [vmem:[%s3 + $0x10] sm:$0xff]
  %v55 = vld [vmem:[%s3 + $0x18] sm:$0xff]
  %v56 = vld [vmem:[%s3 + $0x20] sm:$0xff]
  %v57 = vld [vmem:[%s3 + $0x28] sm:$0xff]
  %v58 = vld [vmem:[%s3 + $0x30] sm:$0xff]
  %v59 = vld [vmem:[%s3 + $0x38] sm:$0xff]
  %v60 = vld [vmem:[%s3 + $0x40] sm:$0xff]
  %v61 = vld [vmem:[%s3 + $0x48] sm:$0xff]
  %v62 = vld [vmem:[%s3 + $0x50] sm:$0xff]
  %v63 = vld [vmem:[%s3 + $0x58] sm:$0xff]
  %v64 = vld [vmem:[%s3 + $0x60] sm:$0xff]
  %v65 = vld [vmem:[%s3 + $0x68] sm:$0xff]
  %v66 = vld [vmem:[%s3 + $0x70] sm:$0xff]
  %v67 = vld [vmem:[%s3 + $0x78] sm:$0xff]
  %v68 = vld [vmem:[%s4] sm:$0x3]
  %v70 = vlaneseq
  %v71 = vshrl.u32 %v70, 7
  %v72 = vsub.s32 0, %v71
  %v73 = vrot.slane %v68, %v72
  %v74 = vlaneseq
  %v75 = vshrl.u32 %v74, 7
  %v76 = vsub.s32 1, %v75
  %v77 = vrot.slane %v68, %v76
  %v96 = vunpack.c.l.b16 %v52
  %v97 = vunpack.c.h.b16 %v52
  %v98 = vunpack.c.l.b16 %v53
  %v99 = vunpack.c.h.b16 %v53
  %v100 = vunpack.c.l.b16 %v54
  %v101 = vunpack.c.h.b16 %v54
  %v102 = vunpack.c.l.b16 %v55
  %v103 = vunpack.c.h.b16 %v55
  %v104 = vunpack.c.l.b16 %v56
  %v105 = vunpack.c.h.b16 %v56
  %v106 = vunpack.c.l.b16 %v57
  %v107 = vunpack.c.h.b16 %v57
  %v108 = vunpack.c.l.b16 %v58
  %v109 = vunpack.c.h.b16 %v58
  %v110 = vunpack.c.l.b16 %v59
  %v111 = vunpack.c.h.b16 %v59
  %v112 = vunpack.c.l.b16 %v60
  %v113 = vunpack.c.h.b16 %v60
  %v114 = vunpack.c.l.b16 %v61
  %v115 = vunpack.c.h.b16 %v61
  %v116 = vunpack.c.l.b16 %v62
  %v117 = vunpack.c.h.b16 %v62
  %v118 = vunpack.c.l.b16 %v63
  %v119 = vunpack.c.h.b16 %v63
  %v120 = vunpack.c.l.b16 %v64
  %v121 = vunpack.c.h.b16 %v64
  %v122 = vunpack.c.l.b16 %v65
  %v123 = vunpack.c.h.b16 %v65
  %v124 = vunpack.c.l.b16 %v66
  %v125 = vunpack.c.h.b16 %v66
  %v126 = vunpack.c.l.b16 %v67
  %v127 = vunpack.c.h.b16 %v67
  %v128 = vpack.c.b16 %v98, %v96
  %v129 = vpack.c.b16 %v99, %v97
  %v130 = vpack.c.b16 %v102, %v100
  %v131 = vpack.c.b16 %v103, %v101
  %v132 = vpack.c.b16 %v106, %v104
  %v133 = vpack.c.b16 %v107, %v105
  %v134 = vpack.c.b16 %v110, %v108
  %v135 = vpack.c.b16 %v111, %v109
  %v136 = vpack.c.b16 %v114, %v112
  %v137 = vpack.c.b16 %v115, %v113
  %v138 = vpack.c.b16 %v118, %v116
  %v139 = vpack.c.b16 %v119, %v117
  %v140 = vpack.c.b16 %v122, %v120
  %v141 = vpack.c.b16 %v123, %v121
  %v142 = vpack.c.b16 %v126, %v124
  %v143 = vpack.c.b16 %v127, %v125
  %160 = vmatprep.subr.bf16.mxu0 %v129
  %161 = vmatpush1.bf16.msra.mxu0 %v128
  %162 = vmatprep.subr.bf16.mxu0 %v131
  %163 = vmatpush1.bf16.msra.mxu0 %v130
  %164 = vmatprep.subr.bf16.mxu0 %v133
  %165 = vmatpush1.bf16.msra.mxu0 %v132
  %166 = vmatprep.subr.bf16.mxu0 %v135
  %167 = vmatpush1.bf16.msra.mxu0 %v134
  %168 = vmatprep.subr.bf16.mxu0 %v137
  %169 = vmatpush1.bf16.msra.mxu0 %v136
  %170 = vmatprep.subr.bf16.mxu0 %v139
  %171 = vmatpush1.bf16.msra.mxu0 %v138
  %172 = vmatprep.subr.bf16.mxu0 %v141
  %173 = vmatpush1.bf16.msra.mxu0 %v140
  %174 = vmatprep.subr.bf16.mxu0 %v143
  %175 = vmatpush1.bf16.msra.mxu0 %v142
  %176 = vmatprep.subr.bf16.mxu0 0
  %177 = vmatpush1.bf16.msra.mxu0 0
  %178 = vmatprep.subr.bf16.mxu0 0
  %179 = vmatpush1.bf16.msra.mxu0 0
  %180 = vmatprep.subr.bf16.mxu0 0
  %181 = vmatpush1.bf16.msra.mxu0 0
  %182 = vmatprep.subr.bf16.mxu0 0
  %183 = vmatpush1.bf16.msra.mxu0 0
  %184 = vmatprep.subr.bf16.mxu0 0
  %185 = vmatpush1.bf16.msra.mxu0 0
  %186 = vmatprep.subr.bf16.mxu0 0
  %187 = vmatpush1.bf16.msra.mxu0 0
  %188 = vmatprep.subr.bf16.mxu0 0
  %189 = vmatpush1.bf16.msra.mxu0 0
  %190 = vmatprep.subr.bf16.mxu0 0
  %191 = vmatpush1.bf16.msra.mxu0 0
  %192 = vmatprep.mubr.bf16.mxu0 0
  %193 = vmatmul.mubr.bf16.gmra.mrb[0].mxu0 %v51
  %v194 = vpop.f32.mrb[0].mxu0
  %v195 = vadd.f32 %v73, %v194
  %v196 = vpop.f32.mrb[0].mxu0
  %v197 = vadd.f32 %v77, %v196
  %v198 = vpop.f32.mrb[0].mxu0
  %v199 = vadd.f32 %v73, %v198
  %v200 = vpop.f32.mrb[0].mxu0
  %v201 = vadd.f32 %v77, %v200
  %202 = vdwg.mxu0
  %v203 = vpack.c.bf16 %v199, %v195
  %v204 = vpack.c.bf16 %v201, %v197
  %v207 = vunpack.c.l.b16 %v203
  %v208 = vunpack.c.l.b16 %v204
  %v209 = vunpack.c.h.b16 %v203
  %v210 = vunpack.c.h.b16 %v204
  %v211 = vpack.c.b16 %v208, %v207
  %v212 = vpack.c.b16 %v210, %v209
  %215 = vst [vmem:[%s5] sm:$0xff] %v211
  %216 = vst [vmem:[%s5 + $0x8] sm:$0xff] %v212
  %s217 = smul.u32 0, 16
  %v218 = vlaneseq
  %v219 = vshrl.u32 %v218, 7
  %v220 = vadd.s32 %v219, 8
  %v221 = vstv %s217
  %v222 = vadd.s32 %v221, %v219
  %v223 = vadd.s32 %v221, %v220
  %vm224 = vcmp.lt.s32.totalorder %v222, 8
  %vm225 = vcmp.lt.s32.totalorder %v223, 8
  %v226 = vsel %vm224, 1, 0
  %v227 = vsel %vm225, 1, 0
  %vm228 = vcmp.eq.s32.totalorder %v226, 1
  %vm229 = vcmp.eq.s32.totalorder %v227, 1
  %v230 = vsel %vm228, %v195, 0.0
  %v231 = vsel %vm228, %v197, 0.0
  %v232 = vsel %vm229, %v199, 0.0
  %v233 = vsel %vm229, %v201, 0.0
  %v234 = vadd.f32 %v230, %v232
  %v235 = vrot.slane %v234, 4
  %v236 = vadd.f32 %v234, %v235
  %v237 = vrot.slane %v236, 2
  %v238 = vadd.f32 %v236, %v237
  %v239 = vrot.slane %v238, 1
  %v240 = vadd.f32 %v238, %v239
  %v241 = vadd.f32 %v231, %v233
  %v242 = vrot.slane %v241, 4
  %v243 = vadd.f32 %v241, %v242
  %v244 = vrot.slane %v243, 2
  %v245 = vadd.f32 %v243, %v244
  %v246 = vrot.slane %v245, 1
  %v247 = vadd.f32 %v245, %v246
  %v248 = vmul.f32 %v230, %v230
  %v249 = vmul.f32 %v231, %v231
  %v250 = vmul.f32 %v232, %v232
  %v251 = vmul.f32 %v233, %v233
  %v252 = vadd.f32 %v248, %v250
  %v253 = vrot.slane %v252, 4
  %v254 = vadd.f32 %v252, %v253
  %v255 = vrot.slane %v254, 2
  %v256 = vadd.f32 %v254, %v255
  %v257 = vrot.slane %v256, 1
  %v258 = vadd.f32 %v256, %v257
  %v259 = vadd.f32 %v249, %v251
  %v260 = vrot.slane %v259, 4
  %v261 = vadd.f32 %v259, %v260
  %v262 = vrot.slane %v261, 2
  %v263 = vadd.f32 %v261, %v262
  %v264 = vrot.slane %v263, 1
  %v265 = vadd.f32 %v263, %v264
  %vm266 = vcmask 1040384
  %v267 = vsel %vm266, %v240, %v258
  %v268 = vsel %vm266, %v247, %v265
  %v271 = vcombine.low %v267, %v268
  %v273 = vunpack.c.l.s4 1983009808
  %v274 = vunpack.c.0.s8 %v273
  %v275 = vlaneseq
  %v276 = vshrl.u32 %v275, 7
  %v277 = vsub.s32 %v274, %v276
  %v278 = vrot.slane %v271, %v277
  %280 = vst [vmem:[%s6] sm:$0xf] %v278
  // Predicated region
  $region22: #{discriminator_forward.7} parent=0 // pred_check
    _
  $region23: #{discriminator_forward.7} parent=0 // pred_check_branch
    %282 = sbr.rel (0) target = $region25
  $region24: #{discriminator_forward.7} parent=0 // pred_region
    _
  $region25: #{discriminator_forward.7} parent=0 // pred_fallthru
    _
  // Predicated region
  $region26: #{discriminator_forward.7} parent=0 // pred_check
    _
  $region27: #{discriminator_forward.7} parent=0 // pred_check_branch
    %284 = sbr.rel (0) target = $region29
  $region28: #{discriminator_forward.7} parent=0 // pred_region
    _
  $region29: #{discriminator_forward.7} parent=0 // pred_fallthru
    _
  // Predicated region
  $region30: #{discriminator_forward.7} parent=0 // pred_check
    _
  $region31: #{discriminator_forward.7} parent=0 // pred_check_branch
    %286 = sbr.rel (0) target = $region33
  $region32: #{discriminator_forward.7} parent=0 // pred_region
    _
  $region33: #{discriminator_forward.7} parent=0 // pred_fallthru
    _
  // Predicated region
  $region34: #{discriminator_forward.7} parent=0 // pred_check
    _
  $region35: #{discriminator_forward.7} parent=0 // pred_check_branch
    %288 = sbr.rel (0) target = $region37
  $region36: #{discriminator_forward.7} parent=0 // pred_region
    _
  $region37: #{discriminator_forward.7} parent=0 // pred_fallthru
    _

// kernel: squeeze.33
$region0: #{squeeze.33}
  %s0 = inlined_call_operand.vmem [shape: f32[8], index: 0, kind: input, shape index: {}]
  %s1 = inlined_call_operand.vmem [shape: f32[2,4], index: 1, kind: output, shape index: {}]
  $region1: #{squeeze.33} parent=0
    #allocation0 [shape = 'u8[4096]{0}', space=vmem, size = 0x1000, scoped, tag = 'scoped mem for output reshape']
    #allocation1 [shape = 'u8[4096]{0}', space=vmem, size = 0x1000, scoped, tag = 'scoped mem for input reshape']
    %s3 = sshllo.u32 0, 1
    %v4 = vld [vmem:[%s0] sm:%s3]
    %5 = vst [vmem:[#allocation1] sm:%s3] %v4
    %v6 = vld [vmem:[#allocation1] sm:$0x1]
    %vm7 = vcmask 31744
    %8 = vst.msk [vmem:[#allocation0] sm:$0x1] %vm7, %v6
    %v9 = vld [vmem:[#allocation1] sm:$0x1]
    %10 = vrot.lane.b32.xlu0 %v9, 124
    %v11 = vpop.permute.xlu0 %10
    %vm12 = vcmask 31744
    %s13 = scalar_lea.vmem [#allocation0], 1
    %14 = vst.msk [vmem:[%s13] sm:$0x1] %vm12, %v11
    %s16 = sshllo.u32 0, 2
    %v18 = vld [vmem:[#allocation0] sm:%s16]
    %s19 = sshllo.u32 0, 2
    %20 = vst [vmem:[%s1] sm:%s19] %v18

// kernel: discriminator_forward.6
$region0: #{discriminator_forward.6}
  #allocation0 [shape = 'u32[]', space=smem, size = 0x4, offset = 0x4, fixed_abs, tag = 'smem constant byte address 0x4 - core index']
  #allocation1 [shape = 'u32[144,128]{1,0:T(1,128)}', space=vmem, size = 0x12000, scoped, tag = 'internal scratch']
  %s0 = inlined_call_operand.vmem [shape: bf16[16,1024], index: 0, kind: input, shape index: {}]
  %s1 = inlined_call_operand.vmem [shape: f32[1,1024], index: 1, kind: input, shape index: {}]
  %s2 = inlined_call_operand.vmem [shape: f32[1,1024], index: 2, kind: input, shape index: {}]
  %s3 = inlined_call_operand.vmem [shape: bf16[1024,128], index: 3, kind: input, shape index: {}]
  %s4 = inlined_call_operand.vmem [shape: f32[1,128], index: 4, kind: input, shape index: {}]
  %s5 = inlined_call_operand.vmem [shape: bf16[16,128], index: 5, kind: output, shape index: {0}]
  %s6 = inlined_call_operand.vmem [shape: f32[1,2,128], index: 6, kind: output, shape index: {1}]
  %7 = xla_tuple %s5, %s6
  %s8 = sld [smem:[#allocation0]]
  $region38: #{discriminator_forward.6} parent=0
    _
  %s10 = ssub.s32 1, %s8
  %s11 = scalar_select 0, %s10, %s8
  // Predicated region
  $region2: #{discriminator_forward.6} parent=0 // pred_check
    _
  $region3: #{discriminator_forward.6} parent=0 // pred_check_branch
    %13 = sbr.rel (0) target = $region5
  $region4: #{discriminator_forward.6} parent=0 // pred_region
    _
  $region5: #{discriminator_forward.6} parent=0 // pred_fallthru
    _
  // Predicated region
  $region6: #{discriminator_forward.6} parent=0 // pred_check
    _
  $region7: #{discriminator_forward.6} parent=0 // pred_check_branch
    %15 = sbr.rel (0) target = $region9
  $region8: #{discriminator_forward.6} parent=0 // pred_region
    _
  $region9: #{discriminator_forward.6} parent=0 // pred_fallthru
    _
  // Predicated region
  $region10: #{discriminator_forward.6} parent=0 // pred_check
    _
  $region11: #{discriminator_forward.6} parent=0 // pred_check_branch
    %17 = sbr.rel (0) target = $region13
  $region12: #{discriminator_forward.6} parent=0 // pred_region
    _
  $region13: #{discriminator_forward.6} parent=0 // pred_fallthru
    _
  // Predicated region
  $region14: #{discriminator_forward.6} parent=0 // pred_check
    _
  $region15: #{discriminator_forward.6} parent=0 // pred_check_branch
    %19 = sbr.rel (0) target = $region17
  $region16: #{discriminator_forward.6} parent=0 // pred_region
    _
  $region17: #{discriminator_forward.6} parent=0 // pred_fallthru
    _
  // Predicated region
  $region18: #{discriminator_forward.6} parent=0 // pred_check
    _
  $region19: #{discriminator_forward.6} parent=0 // pred_check_branch
    %21 = sbr.rel (0) target = $region21
  $region20: #{discriminator_forward.6} parent=0 // pred_region
    _
  $region21: #{discriminator_forward.6} parent=0 // pred_fallthru
    _
  %v23 = vld [vmem:[%s0] sm:$0xff]
  %v24 = vld [vmem:[%s0 + $0x8] sm:$0xff]
  %v25 = vld [vmem:[%s0 + $0x10] sm:$0xff]
  %v26 = vld [vmem:[%s0 + $0x18] sm:$0xff]
  %v27 = vld [vmem:[%s0 + $0x20] sm:$0xff]
  %v28 = vld [vmem:[%s0 + $0x28] sm:$0xff]
  %v29 = vld [vmem:[%s0 + $0x30] sm:$0xff]
  %v30 = vld [vmem:[%s0 + $0x38] sm:$0xff]
  %v31 = vunpack.c.l.bf16 %v23
  %v32 = vunpack.c.h.bf16 %v23
  %v33 = vunpack.c.l.bf16 %v24
  %v34 = vunpack.c.h.bf16 %v24
  %v35 = vunpack.c.l.bf16 %v25
  %v36 = vunpack.c.h.bf16 %v25
  %v37 = vunpack.c.l.bf16 %v26
  %v38 = vunpack.c.h.bf16 %v26
  %v39 = vunpack.c.l.bf16 %v27
  %v40 = vunpack.c.h.bf16 %v27
  %v41 = vunpack.c.l.bf16 %v28
  %v42 = vunpack.c.h.bf16 %v28
  %v43 = vunpack.c.l.bf16 %v29
  %v44 = vunpack.c.h.bf16 %v29
  %v45 = vunpack.c.l.bf16 %v30
  %v46 = vunpack.c.h.bf16 %v30
  %v47 = vld [vmem:[%s1] sm:$0xff]
  %v49 = vlaneseq
  %v50 = vshrl.u32 %v49, 7
  %v51 = vsub.s32 0, %v50
  %v52 = vrot.slane %v47, %v51
  %v53 = vlaneseq
  %v54 = vshrl.u32 %v53, 7
  %v55 = vsub.s32 1, %v54
  %v56 = vrot.slane %v47, %v55
  %v57 = vlaneseq
  %v58 = vshrl.u32 %v57, 7
  %v59 = vsub.s32 2, %v58
  %v60 = vrot.slane %v47, %v59
  %v61 = vlaneseq
  %v62 = vshrl.u32 %v61, 7
  %v63 = vsub.s32 3, %v62
  %v64 = vrot.slane %v47, %v63
  %v65 = vlaneseq
  %v66 = vshrl.u32 %v65, 7
  %v67 = vsub.s32 4, %v66
  %v68 = vrot.slane %v47, %v67
  %v69 = vlaneseq
  %v70 = vshrl.u32 %v69, 7
  %v71 = vsub.s32 5, %v70
  %v72 = vrot.slane %v47, %v71
  %v73 = vlaneseq
  %v74 = vshrl.u32 %v73, 7
  %v75 = vsub.s32 6, %v74
  %v76 = vrot.slane %v47, %v75
  %v77 = vlaneseq
  %v78 = vshrl.u32 %v77, 7
  %v79 = vsub.s32 7, %v78
  %v80 = vrot.slane %v47, %v79
  %v89 = vmul.f32 %v31, %v52
  %v90 = vmul.f32 %v32, %v56
  %v91 = vmul.f32 %v33, %v60
  %v92 = vmul.f32 %v34, %v64
  %v93 = vmul.f32 %v35, %v68
  %v94 = vmul.f32 %v36, %v72
  %v95 = vmul.f32 %v37, %v76
  %v96 = vmul.f32 %v38, %v80
  %v97 = vmul.f32 %v39, %v52
  %v98 = vmul.f32 %v40, %v56
  %v99 = vmul.f32 %v41, %v60
  %v100 = vmul.f32 %v42, %v64
  %v101 = vmul.f32 %v43, %v68
  %v102 = vmul.f32 %v44, %v72
  %v103 = vmul.f32 %v45, %v76
  %v104 = vmul.f32 %v46, %v80
  %v105 = vld [vmem:[%s2] sm:$0xff]
  %v107 = vlaneseq
  %v108 = vshrl.u32 %v107, 7
  %v109 = vsub.s32 0, %v108
  %v110 = vrot.slane %v105, %v109
  %v111 = vlaneseq
  %v112 = vshrl.u32 %v111, 7
  %v113 = vsub.s32 1, %v112
  %v114 = vrot.slane %v105, %v113
  %v115 = vlaneseq
  %v116 = vshrl.u32 %v115, 7
  %v117 = vsub.s32 2, %v116
  %v118 = vrot.slane %v105, %v117
  %v119 = vlaneseq
  %v120 = vshrl.u32 %v119, 7
  %v121 = vsub.s32 3, %v120
  %v122 = vrot.slane %v105, %v121
  %v123 = vlaneseq
  %v124 = vshrl.u32 %v123, 7
  %v125 = vsub.s32 4, %v124
  %v126 = vrot.slane %v105, %v125
  %v127 = vlaneseq
  %v128 = vshrl.u32 %v127, 7
  %v129 = vsub.s32 5, %v128
  %v130 = vrot.slane %v105, %v129
  %v131 = vlaneseq
  %v132 = vshrl.u32 %v131, 7
  %v133 = vsub.s32 6, %v132
  %v134 = vrot.slane %v105, %v133
  %v135 = vlaneseq
  %v136 = vshrl.u32 %v135, 7
  %v137 = vsub.s32 7, %v136
  %v138 = vrot.slane %v105, %v137
  %v147 = vadd.f32 %v89, %v110
  %v148 = vadd.f32 %v90, %v114
  %v149 = vadd.f32 %v91, %v118
  %v150 = vadd.f32 %v92, %v122
  %v151 = vadd.f32 %v93, %v126
  %v152 = vadd.f32 %v94, %v130
  %v153 = vadd.f32 %v95, %v134
  %v154 = vadd.f32 %v96, %v138
  %v155 = vadd.f32 %v97, %v110
  %v156 = vadd.f32 %v98, %v114
  %v157 = vadd.f32 %v99, %v118
  %v158 = vadd.f32 %v100, %v122
  %v159 = vadd.f32 %v101, %v126
  %v160 = vadd.f32 %v102, %v130
  %v161 = vadd.f32 %v103, %v134
  %v162 = vadd.f32 %v104, %v138
  %vm163 = vcmp.ge.f32.partialorder %v147, 0.0
  %vm164 = vcmp.ge.f32.partialorder %v148, 0.0
  %vm165 = vcmp.ge.f32.partialorder %v149, 0.0
  %vm166 = vcmp.ge.f32.partialorder %v150, 0.0
  %vm167 = vcmp.ge.f32.partialorder %v151, 0.0
  %vm168 = vcmp.ge.f32.partialorder %v152, 0.0
  %vm169 = vcmp.ge.f32.partialorder %v153, 0.0
  %vm170 = vcmp.ge.f32.partialorder %v154, 0.0
  %vm171 = vcmp.ge.f32.partialorder %v155, 0.0
  %vm172 = vcmp.ge.f32.partialorder %v156, 0.0
  %vm173 = vcmp.ge.f32.partialorder %v157, 0.0
  %vm174 = vcmp.ge.f32.partialorder %v158, 0.0
  %vm175 = vcmp.ge.f32.partialorder %v159, 0.0
  %vm176 = vcmp.ge.f32.partialorder %v160, 0.0
  %vm177 = vcmp.ge.f32.partialorder %v161, 0.0
  %vm178 = vcmp.ge.f32.partialorder %v162, 0.0
  %v179 = vmul.f32 %v147, 0.01
  %v180 = vmul.f32 %v148, 0.01
  %v181 = vmul.f32 %v149, 0.01
  %v182 = vmul.f32 %v150, 0.01
  %v183 = vmul.f32 %v151, 0.01
  %v184 = vmul.f32 %v152, 0.01
  %v185 = vmul.f32 %v153, 0.01
  %v186 = vmul.f32 %v154, 0.01
  %v187 = vmul.f32 %v155, 0.01
  %v188 = vmul.f32 %v156, 0.01
  %v189 = vmul.f32 %v157, 0.01
  %v190 = vmul.f32 %v158, 0.01
  %v191 = vmul.f32 %v159, 0.01
  %v192 = vmul.f32 %v160, 0.01
  %v193 = vmul.f32 %v161, 0.01
  %v194 = vmul.f32 %v162, 0.01
  %v195 = vsel %vm163, %v147, %v179
  %v196 = vsel %vm164, %v148, %v180
  %v197 = vsel %vm165, %v149, %v181
  %v198 = vsel %vm166, %v150, %v182
  %v199 = vsel %vm167, %v151, %v183
  %v200 = vsel %vm168, %v152, %v184
  %v201 = vsel %vm169, %v153, %v185
  %v202 = vsel %vm170, %v154, %v186
  %v203 = vsel %vm171, %v155, %v187
  %v204 = vsel %vm172, %v156, %v188
  %v205 = vsel %vm173, %v157, %v189
  %v206 = vsel %vm174, %v158, %v190
  %v207 = vsel %vm175, %v159, %v191
  %v208 = vsel %vm176, %v160, %v192
  %v209 = vsel %vm177, %v161, %v193
  %v210 = vsel %vm178, %v162, %v194
  %v211 = vpack.c.bf16 %v203, %v195
  %v212 = vpack.c.bf16 %v204, %v196
  %v213 = vpack.c.bf16 %v205, %v197
  %v214 = vpack.c.bf16 %v206, %v198
  %v215 = vpack.c.bf16 %v207, %v199
  %v216 = vpack.c.bf16 %v208, %v200
  %v217 = vpack.c.bf16 %v209, %v201
  %v218 = vpack.c.bf16 %v210, %v202
  %v219 = vld [vmem:[%s3] sm:$0xf]
  %v220 = vld [vmem:[%s3 + $0x4] sm:$0xf]
  %v221 = vld [vmem:[%s3 + $0x8] sm:$0xf]
  %v222 = vld [vmem:[%s3 + $0xc] sm:$0xf]
  %v223 = vld [vmem:[%s3 + $0x10] sm:$0xf]
  %v224 = vld [vmem:[%s3 + $0x14] sm:$0xf]
  %v225 = vld [vmem:[%s3 + $0x18] sm:$0xf]
  %v226 = vld [vmem:[%s3 + $0x1c] sm:$0xf]
  %v227 = vld [vmem:[%s3 + $0x20] sm:$0xf]
  %v228 = vld [vmem:[%s3 + $0x24] sm:$0xf]
  %v229 = vld [vmem:[%s3 + $0x28] sm:$0xf]
  %v230 = vld [vmem:[%s3 + $0x2c] sm:$0xf]
  %v231 = vld [vmem:[%s3 + $0x30] sm:$0xf]
  %v232 = vld [vmem:[%s3 + $0x34] sm:$0xf]
  %v233 = vld [vmem:[%s3 + $0x38] sm:$0xf]
  %v234 = vld [vmem:[%s3 + $0x3c] sm:$0xf]
  %v235 = vld [vmem:[%s3 + $0x40] sm:$0xf]
  %v236 = vld [vmem:[%s3 + $0x44] sm:$0xf]
  %v237 = vld [vmem:[%s3 + $0x48] sm:$0xf]
  %v238 = vld [vmem:[%s3 + $0x4c] sm:$0xf]
  %v239 = vld [vmem:[%s3 + $0x50] sm:$0xf]
  %v240 = vld [vmem:[%s3 + $0x54] sm:$0xf]
  %v241 = vld [vmem:[%s3 + $0x58] sm:$0xf]
  %v242 = vld [vmem:[%s3 + $0x5c] sm:$0xf]
  %v243 = vld [vmem:[%s3 + $0x60] sm:$0xf]
  %v244 = vld [vmem:[%s3 + $0x64] sm:$0xf]
  %v245 = vld [vmem:[%s3 + $0x68] sm:$0xf]
  %v246 = vld [vmem:[%s3 + $0x6c] sm:$0xf]
  %v247 = vld [vmem:[%s3 + $0x70] sm:$0xf]
  %v248 = vld [vmem:[%s3 + $0x74] sm:$0xf]
  %v249 = vld [vmem:[%s3 + $0x78] sm:$0xf]
  %v250 = vld [vmem:[%s3 + $0x7c] sm:$0xf]
  %v251 = vld [vmem:[%s3 + $0x80] sm:$0xf]
  %v252 = vld [vmem:[%s3 + $0x84] sm:$0xf]
  %v253 = vld [vmem:[%s3 + $0x88] sm:$0xf]
  %v254 = vld [vmem:[%s3 + $0x8c] sm:$0xf]
  %v255 = vld [vmem:[%s3 + $0x90] sm:$0xf]
  %v256 = vld [vmem:[%s3 + $0x94] sm:$0xf]
  %v257 = vld [vmem:[%s3 + $0x98] sm:$0xf]
  %v258 = vld [vmem:[%s3 + $0x9c] sm:$0xf]
  %v259 = vld [vmem:[%s3 + $0xa0] sm:$0xf]
  %v260 = vld [vmem:[%s3 + $0xa4] sm:$0xf]
  %v261 = vld [vmem:[%s3 + $0xa8] sm:$0xf]
  %v262 = vld [vmem:[%s3 + $0xac] sm:$0xf]
  %v263 = vld [vmem:[%s3 + $0xb0] sm:$0xf]
  %v264 = vld [vmem:[%s3 + $0xb4] sm:$0xf]
  %v265 = vld [vmem:[%s3 + $0xb8] sm:$0xf]
  %v266 = vld [vmem:[%s3 + $0xbc] sm:$0xf]
  %v267 = vld [vmem:[%s3 + $0xc0] sm:$0xf]
  %v268 = vld [vmem:[%s3 + $0xc4] sm:$0xf]
  %v269 = vld [vmem:[%s3 + $0xc8] sm:$0xf]
  %v270 = vld [vmem:[%s3 + $0xcc] sm:$0xf]
  %v271 = vld [vmem:[%s3 + $0xd0] sm:$0xf]
  %v272 = vld [vmem:[%s3 + $0xd4] sm:$0xf]
  %v273 = vld [vmem:[%s3 + $0xd8] sm:$0xf]
  %v274 = vld [vmem:[%s3 + $0xdc] sm:$0xf]
  %v275 = vld [vmem:[%s3 + $0xe0] sm:$0xf]
  %v276 = vld [vmem:[%s3 + $0xe4] sm:$0xf]
  %v277 = vld [vmem:[%s3 + $0xe8] sm:$0xf]
  %v278 = vld [vmem:[%s3 + $0xec] sm:$0xf]
  %v279 = vld [vmem:[%s3 + $0xf0] sm:$0xf]
  %v280 = vld [vmem:[%s3 + $0xf4] sm:$0xf]
  %v281 = vld [vmem:[%s3 + $0xf8] sm:$0xf]
  %v282 = vld [vmem:[%s3 + $0xfc] sm:$0xf]
  %v283 = vld [vmem:[%s3 + $0x100] sm:$0xf]
  %v284 = vld [vmem:[%s3 + $0x104] sm:$0xf]
  %v285 = vld [vmem:[%s3 + $0x108] sm:$0xf]
  %v286 = vld [vmem:[%s3 + $0x10c] sm:$0xf]
  %v287 = vld [vmem:[%s3 + $0x110] sm:$0xf]
  %v288 = vld [vmem:[%s3 + $0x114] sm:$0xf]
  %v289 = vld [vmem:[%s3 + $0x118] sm:$0xf]
  %v290 = vld [vmem:[%s3 + $0x11c] sm:$0xf]
  %v291 = vld [vmem:[%s3 + $0x120] sm:$0xf]
  %v292 = vld [vmem:[%s3 + $0x124] sm:$0xf]
  %v293 = vld [vmem:[%s3 + $0x128] sm:$0xf]
  %v294 = vld [vmem:[%s3 + $0x12c] sm:$0xf]
  %v295 = vld [vmem:[%s3 + $0x130] sm:$0xf]
  %v296 = vld [vmem:[%s3 + $0x134] sm:$0xf]
  %v297 = vld [vmem:[%s3 + $0x138] sm:$0xf]
  %v298 = vld [vmem:[%s3 + $0x13c] sm:$0xf]
  %v299 = vld [vmem:[%s3 + $0x140] sm:$0xf]
  %v300 = vld [vmem:[%s3 + $0x144] sm:$0xf]
  %v301 = vld [vmem:[%s3 + $0x148] sm:$0xf]
  %v302 = vld [vmem:[%s3 + $0x14c] sm:$0xf]
  %v303 = vld [vmem:[%s3 + $0x150] sm:$0xf]
  %v304 = vld [vmem:[%s3 + $0x154] sm:$0xf]
  %v305 = vld [vmem:[%s3 + $0x158] sm:$0xf]
  %v306 = vld [vmem:[%s3 + $0x15c] sm:$0xf]
  %v307 = vld [vmem:[%s3 + $0x160] sm:$0xf]
  %v308 = vld [vmem:[%s3 + $0x164] sm:$0xf]
  %v309 = vld [vmem:[%s3 + $0x168] sm:$0xf]
  %v310 = vld [vmem:[%s3 + $0x16c] sm:$0xf]
  %v311 = vld [vmem:[%s3 + $0x170] sm:$0xf]
  %v312 = vld [vmem:[%s3 + $0x174] sm:$0xf]
  %v313 = vld [vmem:[%s3 + $0x178] sm:$0xf]
  %v314 = vld [vmem:[%s3 + $0x17c] sm:$0xf]
  %v315 = vld [vmem:[%s3 + $0x180] sm:$0xf]
  %v316 = vld [vmem:[%s3 + $0x184] sm:$0xf]
  %v317 = vld [vmem:[%s3 + $0x188] sm:$0xf]
  %v318 = vld [vmem:[%s3 + $0x18c] sm:$0xf]
  %v319 = vld [vmem:[%s3 + $0x190] sm:$0xf]
  %v320 = vld [vmem:[%s3 + $0x194] sm:$0xf]
  %v321 = vld [vmem:[%s3 + $0x198] sm:$0xf]
  %v322 = vld [vmem:[%s3 + $0x19c] sm:$0xf]
  %v323 = vld [vmem:[%s3 + $0x1a0] sm:$0xf]
  %v324 = vld [vmem:[%s3 + $0x1a4] sm:$0xf]
  %v325 = vld [vmem:[%s3 + $0x1a8] sm:$0xf]
  %v326 = vld [vmem:[%s3 + $0x1ac] sm:$0xf]
  %v327 = vld [vmem:[%s3 + $0x1b0] sm:$0xf]
  %v328 = vld [vmem:[%s3 + $0x1b4] sm:$0xf]
  %v329 = vld [vmem:[%s3 + $0x1b8] sm:$0xf]
  %v330 = vld [vmem:[%s3 + $0x1bc] sm:$0xf]
  %v331 = vld [vmem:[%s3 + $0x1c0] sm:$0xf]
  %v332 = vld [vmem:[%s3 + $0x1c4] sm:$0xf]
  %v333 = vld [vmem:[%s3 + $0x1c8] sm:$0xf]
  %v334 = vld [vmem:[%s3 + $0x1cc] sm:$0xf]
  %v335 = vld [vmem:[%s3 + $0x1d0] sm:$0xf]
  %v336 = vld [vmem:[%s3 + $0x1d4] sm:$0xf]
  %v337 = vld [vmem:[%s3 + $0x1d8] sm:$0xf]
  %v338 = vld [vmem:[%s3 + $0x1dc] sm:$0xf]
  %v339 = vld [vmem:[%s3 + $0x1e0] sm:$0xf]
  %v340 = vld [vmem:[%s3 + $0x1e4] sm:$0xf]
  %v341 = vld [vmem:[%s3 + $0x1e8] sm:$0xf]
  %v342 = vld [vmem:[%s3 + $0x1ec] sm:$0xf]
  %v343 = vld [vmem:[%s3 + $0x1f0] sm:$0xf]
  %v344 = vld [vmem:[%s3 + $0x1f4] sm:$0xf]
  %v345 = vld [vmem:[%s3 + $0x1f8] sm:$0xf]
  %v346 = vld [vmem:[%s3 + $0x1fc] sm:$0xf]
  %v347 = vld [vmem:[%s4] sm:$0x1]
  %v349 = vlaneseq
  %v350 = vshrl.u32 %v349, 7
  %v351 = vsub.s32 0, %v350
  %v352 = vrot.slane %v347, %v351
  %v482 = vunpack.c.l.b16 %v219
  %v483 = vunpack.c.l.b16 %v220
  %v484 = vunpack.c.l.b16 %v221
  %v485 = vunpack.c.l.b16 %v222
  %v486 = vunpack.c.l.b16 %v223
  %v487 = vunpack.c.l.b16 %v224
  %v488 = vunpack.c.l.b16 %v225
  %v489 = vunpack.c.l.b16 %v226
  %v490 = vunpack.c.l.b16 %v227
  %v491 = vunpack.c.l.b16 %v228
  %v492 = vunpack.c.l.b16 %v229
  %v493 = vunpack.c.l.b16 %v230
  %v494 = vunpack.c.l.b16 %v231
  %v495 = vunpack.c.l.b16 %v232
  %v496 = vunpack.c.l.b16 %v233
  %v497 = vunpack.c.l.b16 %v234
  %v498 = vunpack.c.l.b16 %v235
  %v499 = vunpack.c.l.b16 %v236
  %v500 = vunpack.c.l.b16 %v237
  %v501 = vunpack.c.l.b16 %v238
  %v502 = vunpack.c.l.b16 %v239
  %v503 = vunpack.c.l.b16 %v240
  %v504 = vunpack.c.l.b16 %v241
  %v505 = vunpack.c.l.b16 %v242
  %v506 = vunpack.c.l.b16 %v243
  %v507 = vunpack.c.l.b16 %v244
  %v508 = vunpack.c.l.b16 %v245
  %v509 = vunpack.c.l.b16 %v246
  %v510 = vunpack.c.l.b16 %v247
  %v511 = vunpack.c.l.b16 %v248
  %v512 = vunpack.c.l.b16 %v249
  %v513 = vunpack.c.l.b16 %v250
  %v514 = vunpack.c.l.b16 %v251
  %v515 = vunpack.c.l.b16 %v252
  %v516 = vunpack.c.l.b16 %v253
  %v517 = vunpack.c.l.b16 %v254
  %v518 = vunpack.c.l.b16 %v255
  %v519 = vunpack.c.l.b16 %v256
  %v520 = vunpack.c.l.b16 %v257
  %v521 = vunpack.c.l.b16 %v258
  %v522 = vunpack.c.l.b16 %v259
  %v523 = vunpack.c.l.b16 %v260
  %v524 = vunpack.c.l.b16 %v261
  %v525 = vunpack.c.l.b16 %v262
  %v526 = vunpack.c.l.b16 %v263
  %v527 = vunpack.c.l.b16 %v264
  %v528 = vunpack.c.l.b16 %v265
  %v529 = vunpack.c.l.b16 %v266
  %v530 = vunpack.c.l.b16 %v267
  %v531 = vunpack.c.l.b16 %v268
  %v532 = vunpack.c.l.b16 %v269
  %v533 = vunpack.c.l.b16 %v270
  %v534 = vunpack.c.l.b16 %v271
  %v535 = vunpack.c.l.b16 %v272
  %v536 = vunpack.c.l.b16 %v273
  %v537 = vunpack.c.l.b16 %v274
  %v538 = vunpack.c.l.b16 %v275
  %v539 = vunpack.c.l.b16 %v276
  %v540 = vunpack.c.l.b16 %v277
  %v541 = vunpack.c.l.b16 %v278
  %v542 = vunpack.c.l.b16 %v279
  %v543 = vunpack.c.l.b16 %v280
  %v544 = vunpack.c.l.b16 %v281
  %v545 = vunpack.c.l.b16 %v282
  %v546 = vunpack.c.l.b16 %v283
  %v547 = vunpack.c.l.b16 %v284
  %v548 = vunpack.c.l.b16 %v285
  %v549 = vunpack.c.l.b16 %v286
  %v550 = vunpack.c.l.b16 %v287
  %v551 = vunpack.c.l.b16 %v288
  %v552 = vunpack.c.l.b16 %v289
  %v553 = vunpack.c.l.b16 %v290
  %v554 = vunpack.c.l.b16 %v291
  %v555 = vunpack.c.l.b16 %v292
  %v556 = vunpack.c.l.b16 %v293
  %v557 = vunpack.c.l.b16 %v294
  %v558 = vunpack.c.l.b16 %v295
  %v559 = vunpack.c.l.b16 %v296
  %v560 = vunpack.c.l.b16 %v297
  %v561 = vunpack.c.l.b16 %v298
  %v562 = vunpack.c.l.b16 %v299
  %v563 = vunpack.c.l.b16 %v300
  %v564 = vunpack.c.l.b16 %v301
  %v565 = vunpack.c.l.b16 %v302
  %v566 = vunpack.c.l.b16 %v303
  %v567 = vunpack.c.l.b16 %v304
  %v568 = vunpack.c.l.b16 %v305
  %v569 = vunpack.c.l.b16 %v306
  %v570 = vunpack.c.l.b16 %v307
  %v571 = vunpack.c.l.b16 %v308
  %v572 = vunpack.c.l.b16 %v309
  %v573 = vunpack.c.l.b16 %v310
  %v574 = vunpack.c.l.b16 %v311
  %v575 = vunpack.c.l.b16 %v312
  %v576 = vunpack.c.l.b16 %v313
  %v577 = vunpack.c.l.b16 %v314
  %v578 = vunpack.c.l.b16 %v315
  %v579 = vunpack.c.l.b16 %v316
  %v580 = vunpack.c.l.b16 %v317
  %v581 = vunpack.c.l.b16 %v318
  %v582 = vunpack.c.l.b16 %v319
  %v583 = vunpack.c.l.b16 %v320
  %v584 = vunpack.c.l.b16 %v321
  %v585 = vunpack.c.l.b16 %v322
  %v586 = vunpack.c.l.b16 %v323
  %v587 = vunpack.c.l.b16 %v324
  %v588 = vunpack.c.l.b16 %v325
  %v589 = vunpack.c.l.b16 %v326
  %v590 = vunpack.c.l.b16 %v327
  %v591 = vunpack.c.l.b16 %v328
  %v592 = vunpack.c.l.b16 %v329
  %v593 = vunpack.c.l.b16 %v330
  %v594 = vunpack.c.l.b16 %v331
  %v595 = vunpack.c.l.b16 %v332
  %v596 = vunpack.c.l.b16 %v333
  %v597 = vunpack.c.l.b16 %v334
  %v598 = vunpack.c.l.b16 %v335
  %v599 = vunpack.c.l.b16 %v336
  %v600 = vunpack.c.l.b16 %v337
  %v601 = vunpack.c.l.b16 %v338
  %v602 = vunpack.c.l.b16 %v339
  %v603 = vunpack.c.l.b16 %v340
  %v604 = vunpack.c.l.b16 %v341
  %v605 = vunpack.c.l.b16 %v342
  %v606 = vunpack.c.l.b16 %v343
  %v607 = vunpack.c.l.b16 %v344
  %v608 = vunpack.c.l.b16 %v345
  %v609 = vunpack.c.l.b16 %v346
  %v610 = vpack.c.b16 %v483, %v482
  %v611 = vpack.c.b16 %v485, %v484
  %v612 = vpack.c.b16 %v487, %v486
  %v613 = vpack.c.b16 %v489, %v488
  %v614 = vpack.c.b16 %v491, %v490
  %v615 = vpack.c.b16 %v493, %v492
  %v616 = vpack.c.b16 %v495, %v494
  %v617 = vpack.c.b16 %v497, %v496
  %v618 = vpack.c.b16 %v499, %v498
  %v619 = vpack.c.b16 %v501, %v500
  %v620 = vpack.c.b16 %v503, %v502
  %v621 = vpack.c.b16 %v505, %v504
  %v622 = vpack.c.b16 %v507, %v506
  %v623 = vpack.c.b16 %v509, %v508
  %v624 = vpack.c.b16 %v511, %v510
  %v625 = vpack.c.b16 %v513, %v512
  %v626 = vpack.c.b16 %v515, %v514
  %v627 = vpack.c.b16 %v517, %v516
  %v628 = vpack.c.b16 %v519, %v518
  %v629 = vpack.c.b16 %v521, %v520
  %v630 = vpack.c.b16 %v523, %v522
  %v631 = vpack.c.b16 %v525, %v524
  %v632 = vpack.c.b16 %v527, %v526
  %v633 = vpack.c.b16 %v529, %v528
  %v634 = vpack.c.b16 %v531, %v530
  %v635 = vpack.c.b16 %v533, %v532
  %v636 = vpack.c.b16 %v535, %v534
  %v637 = vpack.c.b16 %v537, %v536
  %v638 = vpack.c.b16 %v539, %v538
  %v639 = vpack.c.b16 %v541, %v540
  %v640 = vpack.c.b16 %v543, %v542
  %v641 = vpack.c.b16 %v545, %v544
  %v642 = vpack.c.b16 %v547, %v546
  %v643 = vpack.c.b16 %v549, %v548
  %v644 = vpack.c.b16 %v551, %v550
  %v645 = vpack.c.b16 %v553, %v552
  %v646 = vpack.c.b16 %v555, %v554
  %v647 = vpack.c.b16 %v557, %v556
  %v648 = vpack.c.b16 %v559, %v558
  %v649 = vpack.c.b16 %v561, %v560
  %v650 = vpack.c.b16 %v563, %v562
  %v651 = vpack.c.b16 %v565, %v564
  %v652 = vpack.c.b16 %v567, %v566
  %v653 = vpack.c.b16 %v569, %v568
  %v654 = vpack.c.b16 %v571, %v570
  %v655 = vpack.c.b16 %v573, %v572
  %v656 = vpack.c.b16 %v575, %v574
  %v657 = vpack.c.b16 %v577, %v576
  %v658 = vpack.c.b16 %v579, %v578
  %v659 = vpack.c.b16 %v581, %v580
  %v660 = vpack.c.b16 %v583, %v582
  %v661 = vpack.c.b16 %v585, %v584
  %v662 = vpack.c.b16 %v587, %v586
  %v663 = vpack.c.b16 %v589, %v588
  %v664 = vpack.c.b16 %v591, %v590
  %v665 = vpack.c.b16 %v593, %v592
  %v666 = vpack.c.b16 %v595, %v594
  %v667 = vpack.c.b16 %v597, %v596
  %v668 = vpack.c.b16 %v599, %v598
  %v669 = vpack.c.b16 %v601, %v600
  %v670 = vpack.c.b16 %v603, %v602
  %v671 = vpack.c.b16 %v605, %v604
  %v672 = vpack.c.b16 %v607, %v606
  %v673 = vpack.c.b16 %v609, %v608
  %738 = vmatprep.subr.bf16.mxu0 0
  %739 = vmatpush1.bf16.msra.mxu0 %v610
  %740 = vmatprep.subr.bf16.mxu0 0
  %741 = vmatpush1.bf16.msra.mxu0 %v611
  %742 = vmatprep.subr.bf16.mxu0 0
  %743 = vmatpush1.bf16.msra.mxu0 %v612
  %744 = vmatprep.subr.bf16.mxu0 0
  %745 = vmatpush1.bf16.msra.mxu0 %v613
  %746 = vmatprep.subr.bf16.mxu0 0
  %747 = vmatpush1.bf16.msra.mxu0 %v614
  %748 = vmatprep.subr.bf16.mxu0 0
  %749 = vmatpush1.bf16.msra.mxu0 %v615
  %750 = vmatprep.subr.bf16.mxu0 0
  %751 = vmatpush1.bf16.msra.mxu0 %v616
  %752 = vmatprep.subr.bf16.mxu0 0
  %753 = vmatpush1.bf16.msra.mxu0 %v617
  %754 = vmatprep.subr.bf16.mxu0 0
  %755 = vmatpush1.bf16.msra.mxu0 %v618
  %756 = vmatprep.subr.bf16.mxu0 0
  %757 = vmatpush1.bf16.msra.mxu0 %v619
  %758 = vmatprep.subr.bf16.mxu0 0
  %759 = vmatpush1.bf16.msra.mxu0 %v620
  %760 = vmatprep.subr.bf16.mxu0 0
  %761 = vmatpush1.bf16.msra.mxu0 %v621
  %762 = vmatprep.subr.bf16.mxu0 0
  %763 = vmatpush1.bf16.msra.mxu0 %v622
  %764 = vmatprep.subr.bf16.mxu0 0
  %765 = vmatpush1.bf16.msra.mxu0 %v623
  %766 = vmatprep.subr.bf16.mxu0 0
  %767 = vmatpush1.bf16.msra.mxu0 %v624
  %768 = vmatprep.subr.bf16.mxu0 0
  %769 = vmatpush1.bf16.msra.mxu0 %v625
  %770 = vmatprep.mubr.bf16.mxu0 %v212
  %771 = vmatmul.mubr.bf16.gmra.mrb[0].mxu0 %v211
  %v772 = vpop.f32.mrb[0].mxu0
  %v773 = vadd.f32 %v352, %v772
  %v774 = vpop.f32.mrb[0].mxu0
  %v775 = vpop.f32.mrb[0].mxu0
  %v776 = vadd.f32 %v352, %v775
  %v777 = vpop.f32.mrb[0].mxu0
  %778 = vdwg.mxu0
  %779 = vmatprep.subr.bf16.mxu0 0
  %780 = vmatpush1.bf16.msra.mxu0 %v626
  %781 = vmatprep.subr.bf16.mxu0 0
  %782 = vmatpush1.bf16.msra.mxu0 %v627
  %783 = vmatprep.subr.bf16.mxu0 0
  %784 = vmatpush1.bf16.msra.mxu0 %v628
  %785 = vmatprep.subr.bf16.mxu0 0
  %786 = vmatpush1.bf16.msra.mxu0 %v629
  %787 = vmatprep.subr.bf16.mxu0 0
  %788 = vmatpush1.bf16.msra.mxu0 %v630
  %789 = vmatprep.subr.bf16.mxu0 0
  %790 = vmatpush1.bf16.msra.mxu0 %v631
  %791 = vmatprep.subr.bf16.mxu0 0
  %792 = vmatpush1.bf16.msra.mxu0 %v632
  %793 = vmatprep.subr.bf16.mxu0 0
  %794 = vmatpush1.bf16.msra.mxu0 %v633
  %795 = vmatprep.subr.bf16.mxu0 0
  %796 = vmatpush1.bf16.msra.mxu0 %v634
  %797 = vmatprep.subr.bf16.mxu0 0
  %798 = vmatpush1.bf16.msra.mxu0 %v635
  %799 = vmatprep.subr.bf16.mxu0 0
  %800 = vmatpush1.bf16.msra.mxu0 %v636
  %801 = vmatprep.subr.bf16.mxu0 0
  %802 = vmatpush1.bf16.msra.mxu0 %v637
  %803 = vmatprep.subr.bf16.mxu0 0
  %804 = vmatpush1.bf16.msra.mxu0 %v638
  %805 = vmatprep.subr.bf16.mxu0 0
  %806 = vmatpush1.bf16.msra.mxu0 %v639
  %807 = vmatprep.subr.bf16.mxu0 0
  %808 = vmatpush1.bf16.msra.mxu0 %v640
  %809 = vmatprep.subr.bf16.mxu0 0
  %810 = vmatpush1.bf16.msra.mxu0 %v641
  %811 = vmatprep.mubr.bf16.mxu0 %v214
  %812 = vmatmul.mubr.bf16.gmra.mrb[0].mxu0 %v213
  %v813 = vpop.f32.mrb[0].mxu0
  %v814 = vadd.f32 %v773, %v813
  %v815 = vpop.f32.mrb[0].mxu0
  %v816 = vpop.f32.mrb[0].mxu0
  %v817 = vadd.f32 %v776, %v816
  %v818 = vpop.f32.mrb[0].mxu0
  %819 = vdwg.mxu0
  %820 = vmatprep.subr.bf16.mxu0 0
  %821 = vmatpush1.bf16.msra.mxu0 %v642
  %822 = vmatprep.subr.bf16.mxu0 0
  %823 = vmatpush1.bf16.msra.mxu0 %v643
  %824 = vmatprep.subr.bf16.mxu0 0
  %825 = vmatpush1.bf16.msra.mxu0 %v644
  %826 = vmatprep.subr.bf16.mxu0 0
  %827 = vmatpush1.bf16.msra.mxu0 %v645
  %828 = vmatprep.subr.bf16.mxu0 0
  %829 = vmatpush1.bf16.msra.mxu0 %v646
  %830 = vmatprep.subr.bf16.mxu0 0
  %831 = vmatpush1.bf16.msra.mxu0 %v647
  %832 = vmatprep.subr.bf16.mxu0 0
  %833 = vmatpush1.bf16.msra.mxu0 %v648
  %834 = vmatprep.subr.bf16.mxu0 0
  %835 = vmatpush1.bf16.msra.mxu0 %v649
  %836 = vmatprep.subr.bf16.mxu0 0
  %837 = vmatpush1.bf16.msra.mxu0 %v650
  %838 = vmatprep.subr.bf16.mxu0 0
  %839 = vmatpush1.bf16.msra.mxu0 %v651
  %840 = vmatprep.subr.bf16.mxu0 0
  %841 = vmatpush1.bf16.msra.mxu0 %v652
  %842 = vmatprep.subr.bf16.mxu0 0
  %843 = vmatpush1.bf16.msra.mxu0 %v653
  %844 = vmatprep.subr.bf16.mxu0 0
  %845 = vmatpush1.bf16.msra.mxu0 %v654
  %846 = vmatprep.subr.bf16.mxu0 0
  %847 = vmatpush1.bf16.msra.mxu0 %v655
  %848 = vmatprep.subr.bf16.mxu0 0
  %849 = vmatpush1.bf16.msra.mxu0 %v656
  %850 = vmatprep.subr.bf16.mxu0 0
  %851 = vmatpush1.bf16.msra.mxu0 %v657
  %852 = vmatprep.mubr.bf16.mxu0 %v216
  %853 = vmatmul.mubr.bf16.gmra.mrb[0].mxu0 %v215
  %v854 = vpop.f32.mrb[0].mxu0
  %v855 = vadd.f32 %v814, %v854
  %v856 = vpop.f32.mrb[0].mxu0
  %v857 = vpop.f32.mrb[0].mxu0
  %v858 = vadd.f32 %v817, %v857
  %v859 = vpop.f32.mrb[0].mxu0
  %860 = vdwg.mxu0
  %861 = vmatprep.subr.bf16.mxu0 0
  %862 = vmatpush1.bf16.msra.mxu0 %v658
  %863 = vmatprep.subr.bf16.mxu0 0
  %864 = vmatpush1.bf16.msra.mxu0 %v659
  %865 = vmatprep.subr.bf16.mxu0 0
  %866 = vmatpush1.bf16.msra.mxu0 %v660
  %867 = vmatprep.subr.bf16.mxu0 0
  %868 = vmatpush1.bf16.msra.mxu0 %v661
  %869 = vmatprep.subr.bf16.mxu0 0
  %870 = vmatpush1.bf16.msra.mxu0 %v662
  %871 = vmatprep.subr.bf16.mxu0 0
  %872 = vmatpush1.bf16.msra.mxu0 %v663
  %873 = vmatprep.subr.bf16.mxu0 0
  %874 = vmatpush1.bf16.msra.mxu0 %v664
  %875 = vmatprep.subr.bf16.mxu0 0
  %876 = vmatpush1.bf16.msra.mxu0 %v665
  %877 = vmatprep.subr.bf16.mxu0 0
  %878 = vmatpush1.bf16.msra.mxu0 %v666
  %879 = vmatprep.subr.bf16.mxu0 0
  %880 = vmatpush1.bf16.msra.mxu0 %v667
  %881 = vmatprep.subr.bf16.mxu0 0
  %882 = vmatpush1.bf16.msra.mxu0 %v668
  %883 = vmatprep.subr.bf16.mxu0 0
  %884 = vmatpush1.bf16.msra.mxu0 %v669
  %885 = vmatprep.subr.bf16.mxu0 0
  %886 = vmatpush1.bf16.msra.mxu0 %v670
  %887 = vmatprep.subr.bf16.mxu0 0
  %888 = vmatpush1.bf16.msra.mxu0 %v671
  %889 = vmatprep.subr.bf16.mxu0 0
  %890 = vmatpush1.bf16.msra.mxu0 %v672
  %891 = vmatprep.subr.bf16.mxu0 0
  %892 = vmatpush1.bf16.msra.mxu0 %v673
  %893 = vmatprep.mubr.bf16.mxu0 %v218
  %894 = vmatmul.mubr.bf16.gmra.mrb[0].mxu0 %v217
  %v895 = vpop.f32.mrb[0].mxu0
  %v896 = vadd.f32 %v855, %v895
  %v897 = vpop.f32.mrb[0].mxu0
  %v898 = vpop.f32.mrb[0].mxu0
  %v899 = vadd.f32 %v858, %v898
  %v900 = vpop.f32.mrb[0].mxu0
  %901 = vdwg.mxu0
  %v902 = vpack.c.bf16 %v899, %v896
  %v904 = vunpack.c.l.b16 %v902
  %v905 = vunpack.c.h.b16 %v902
  %v906 = vpack.c.b16 %v904, %v904
  %v907 = vpack.c.b16 %v905, %v905
  %910 = vst [vmem:[%s5] sm:$0xf] %v906
  %911 = vst [vmem:[%s5 + $0x4] sm:$0xf] %v907
  %s912 = smul.u32 0, 16
  %v913 = vlaneseq
  %v914 = vshrl.u32 %v913, 7
  %v915 = vadd.s32 %v914, 8
  %v916 = vstv %s912
  %v917 = vadd.s32 %v916, %v914
  %v918 = vadd.s32 %v916, %v915
  %vm919 = vcmp.lt.s32.totalorder %v917, 8
  %vm920 = vcmp.lt.s32.totalorder %v918, 8
  %v921 = vsel %vm919, 1, 0
  %v922 = vsel %vm920, 1, 0
  %vm923 = vcmp.eq.s32.totalorder %v921, 1
  %vm924 = vcmp.eq.s32.totalorder %v922, 1
  %v925 = vsel %vm923, %v896, 0.0
  %v926 = vsel %vm924, %v899, 0.0
  %v927 = vadd.f32 %v925, %v926
  %v928 = vrot.slane %v927, 4
  %v929 = vadd.f32 %v927, %v928
  %v930 = vrot.slane %v929, 2
  %v931 = vadd.f32 %v929, %v930
  %v932 = vrot.slane %v931, 1
  %v933 = vadd.f32 %v931, %v932
  %v934 = vmul.f32 %v925, %v925
  %v935 = vmul.f32 %v926, %v926
  %v936 = vadd.f32 %v934, %v935
  %v937 = vrot.slane %v936, 4
  %v938 = vadd.f32 %v936, %v937
  %v939 = vrot.slane %v938, 2
  %v940 = vadd.f32 %v938, %v939
  %v941 = vrot.slane %v940, 1
  %v942 = vadd.f32 %v940, %v941
  %vm943 = vcmask 1040384
  %v944 = vsel %vm943, %v933, %v942
  %945 = vst [vmem:[%s6] sm:$0x3] %v944
  // Predicated region
  $region22: #{discriminator_forward.6} parent=0 // pred_check
    _
  $region23: #{discriminator_forward.6} parent=0 // pred_check_branch
    %947 = sbr.rel (0) target = $region25
  $region24: #{discriminator_forward.6} parent=0 // pred_region
    _
  $region25: #{discriminator_forward.6} parent=0 // pred_fallthru
    _
  // Predicated region
  $region26: #{discriminator_forward.6} parent=0 // pred_check
    _
  $region27: #{discriminator_forward.6} parent=0 // pred_check_branch
    %949 = sbr.rel (0) target = $region29
  $region28: #{discriminator_forward.6} parent=0 // pred_region
    _
  $region29: #{discriminator_forward.6} parent=0 // pred_fallthru
    _
  // Predicated region
  $region30: #{discriminator_forward.6} parent=0 // pred_check
    _
  $region31: #{discriminator_forward.6} parent=0 // pred_check_branch
    %951 = sbr.rel (0) target = $region33
  $region32: #{discriminator_forward.6} parent=0 // pred_region
    _
  $region33: #{discriminator_forward.6} parent=0 // pred_fallthru
    _
  // Predicated region
  $region34: #{discriminator_forward.6} parent=0 // pred_check
    _
  $region35: #{discriminator_forward.6} parent=0 // pred_check_branch
    %953 = sbr.rel (0) target = $region37
  $region36: #{discriminator_forward.6} parent=0 // pred_region
    _
  $region37: #{discriminator_forward.6} parent=0 // pred_fallthru
    _

// kernel: discriminator_forward.8
$region0: #{discriminator_forward.8}
  #allocation0 [shape = 'u32[]', space=smem, size = 0x4, offset = 0x4, fixed_abs, tag = 'smem constant byte address 0x4 - core index']
  #allocation1 [shape = 'u32[144,128]{1,0:T(1,128)}', space=vmem, size = 0x12000, scoped, tag = 'internal scratch']
  %s0 = inlined_call_operand.vmem [shape: bf16[16,256], index: 0, kind: input, shape index: {}]
  %s1 = inlined_call_operand.vmem [shape: f32[1,256], index: 1, kind: input, shape index: {}]
  %s2 = inlined_call_operand.vmem [shape: f32[1,256], index: 2, kind: input, shape index: {}]
  %s3 = inlined_call_operand.vmem [shape: bf16[256,512], index: 3, kind: input, shape index: {}]
  %s4 = inlined_call_operand.vmem [shape: f32[1,512], index: 4, kind: input, shape index: {}]
  %s5 = inlined_call_operand.vmem [shape: bf16[16,512], index: 5, kind: output, shape index: {0}]
  %s6 = inlined_call_operand.vmem [shape: f32[1,2,512], index: 6, kind: output, shape index: {1}]
  %7 = xla_tuple %s5, %s6
  %s8 = sld [smem:[#allocation0]]
  $region38: #{discriminator_forward.8} parent=0
    _
  %s10 = ssub.s32 1, %s8
  %s11 = scalar_select 0, %s10, %s8
  // Predicated region
  $region2: #{discriminator_forward.8} parent=0 // pred_check
    _
  $region3: #{discriminator_forward.8} parent=0 // pred_check_branch
    %13 = sbr.rel (0) target = $region5
  $region4: #{discriminator_forward.8} parent=0 // pred_region
    _
  $region5: #{discriminator_forward.8} parent=0 // pred_fallthru
    _
  // Predicated region
  $region6: #{discriminator_forward.8} parent=0 // pred_check
    _
  $region7: #{discriminator_forward.8} parent=0 // pred_check_branch
    %15 = sbr.rel (0) target = $region9
  $region8: #{discriminator_forward.8} parent=0 // pred_region
    _
  $region9: #{discriminator_forward.8} parent=0 // pred_fallthru
    _
  // Predicated region
  $region10: #{discriminator_forward.8} parent=0 // pred_check
    _
  $region11: #{discriminator_forward.8} parent=0 // pred_check_branch
    %17 = sbr.rel (0) target = $region13
  $region12: #{discriminator_forward.8} parent=0 // pred_region
    _
  $region13: #{discriminator_forward.8} parent=0 // pred_fallthru
    _
  // Predicated region
  $region14: #{discriminator_forward.8} parent=0 // pred_check
    _
  $region15: #{discriminator_forward.8} parent=0 // pred_check_branch
    %19 = sbr.rel (0) target = $region17
  $region16: #{discriminator_forward.8} parent=0 // pred_region
    _
  $region17: #{discriminator_forward.8} parent=0 // pred_fallthru
    _
  // Predicated region
  $region18: #{discriminator_forward.8} parent=0 // pred_check
    _
  $region19: #{discriminator_forward.8} parent=0 // pred_check_branch
    %21 = sbr.rel (0) target = $region21
  $region20: #{discriminator_forward.8} parent=0 // pred_region
    _
  $region21: #{discriminator_forward.8} parent=0 // pred_fallthru
    _
  %v22 = vld [vmem:[%s0] sm:$0xff]
  %v23 = vld [vmem:[%s0 + $0x8] sm:$0xff]
  %v24 = vunpack.c.l.bf16 %v22
  %v25 = vunpack.c.h.bf16 %v22
  %v26 = vunpack.c.l.bf16 %v23
  %v27 = vunpack.c.h.bf16 %v23
  %v28 = vld [vmem:[%s1] sm:$0x3]
  %v30 = vlaneseq
  %v31 = vshrl.u32 %v30, 7
  %v32 = vsub.s32 0, %v31
  %v33 = vrot.slane %v28, %v32
  %v34 = vlaneseq
  %v35 = vshrl.u32 %v34, 7
  %v36 = vsub.s32 1, %v35
  %v37 = vrot.slane %v28, %v36
  %v40 = vmul.f32 %v24, %v33
  %v41 = vmul.f32 %v25, %v37
  %v42 = vmul.f32 %v26, %v33
  %v43 = vmul.f32 %v27, %v37
  %v44 = vld [vmem:[%s2] sm:$0x3]
  %v46 = vlaneseq
  %v47 = vshrl.u32 %v46, 7
  %v48 = vsub.s32 0, %v47
  %v49 = vrot.slane %v44, %v48
  %v50 = vlaneseq
  %v51 = vshrl.u32 %v50, 7
  %v52 = vsub.s32 1, %v51
  %v53 = vrot.slane %v44, %v52
  %v56 = vadd.f32 %v40, %v49
  %v57 = vadd.f32 %v41, %v53
  %v58 = vadd.f32 %v42, %v49
  %v59 = vadd.f32 %v43, %v53
  %vm60 = vcmp.ge.f32.partialorder %v56, 0.0
  %vm61 = vcmp.ge.f32.partialorder %v57, 0.0
  %vm62 = vcmp.ge.f32.partialorder %v58, 0.0
  %vm63 = vcmp.ge.f32.partialorder %v59, 0.0
  %v64 = vmul.f32 %v56, 0.01
  %v65 = vmul.f32 %v57, 0.01
  %v66 = vmul.f32 %v58, 0.01
  %v67 = vmul.f32 %v59, 0.01
  %v68 = vsel %vm60, %v56, %v64
  %v69 = vsel %vm61, %v57, %v65
  %v70 = vsel %vm62, %v58, %v66
  %v71 = vsel %vm63, %v59, %v67
  %v72 = vpack.c.bf16 %v70, %v68
  %v73 = vpack.c.bf16 %v71, %v69
  %v74 = vld [vmem:[%s3] sm:$0xff]
  %v75 = vld [vmem:[%s3 + $0x8] sm:$0xff]
  %v76 = vld [vmem:[%s3 + $0x10] sm:$0xff]
  %v77 = vld [vmem:[%s3 + $0x18] sm:$0xff]
  %v78 = vld [vmem:[%s3 + $0x20] sm:$0xff]
  %v79 = vld [vmem:[%s3 + $0x28] sm:$0xff]
  %v80 = vld [vmem:[%s3 + $0x30] sm:$0xff]
  %v81 = vld [vmem:[%s3 + $0x38] sm:$0xff]
  %v82 = vld [vmem:[%s3 + $0x40] sm:$0xff]
  %v83 = vld [vmem:[%s3 + $0x48] sm:$0xff]
  %v84 = vld [vmem:[%s3 + $0x50] sm:$0xff]
  %v85 = vld [vmem:[%s3 + $0x58] sm:$0xff]
  %v86 = vld [vmem:[%s3 + $0x60] sm:$0xff]
  %v87 = vld [vmem:[%s3 + $0x68] sm:$0xff]
  %v88 = vld [vmem:[%s3 + $0x70] sm:$0xff]
  %v89 = vld [vmem:[%s3 + $0x78] sm:$0xff]
  %v90 = vld [vmem:[%s3 + $0x80] sm:$0xff]
  %v91 = vld [vmem:[%s3 + $0x88] sm:$0xff]
  %v92 = vld [vmem:[%s3 + $0x90] sm:$0xff]
  %v93 = vld [vmem:[%s3 + $0x98] sm:$0xff]
  %v94 = vld [vmem:[%s3 + $0xa0] sm:$0xff]
  %v95 = vld [vmem:[%s3 + $0xa8] sm:$0xff]
  %v96 = vld [vmem:[%s3 + $0xb0] sm:$0xff]
  %v97 = vld [vmem:[%s3 + $0xb8] sm:$0xff]
  %v98 = vld [vmem:[%s3 + $0xc0] sm:$0xff]
  %v99 = vld [vmem:[%s3 + $0xc8] sm:$0xff]
  %v100 = vld [vmem:[%s3 + $0xd0] sm:$0xff]
  %v101 = vld [vmem:[%s3 + $0xd8] sm:$0xff]
  %v102 = vld [vmem:[%s3 + $0xe0] sm:$0xff]
  %v103 = vld [vmem:[%s3 + $0xe8] sm:$0xff]
  %v104 = vld [vmem:[%s3 + $0xf0] sm:$0xff]
  %v105 = vld [vmem:[%s3 + $0xf8] sm:$0xff]
  %v106 = vld [vmem:[%s3 + $0x100] sm:$0xff]
  %v107 = vld [vmem:[%s3 + $0x108] sm:$0xff]
  %v108 = vld [vmem:[%s3 + $0x110] sm:$0xff]
  %v109 = vld [vmem:[%s3 + $0x118] sm:$0xff]
  %v110 = vld [vmem:[%s3 + $0x120] sm:$0xff]
  %v111 = vld [vmem:[%s3 + $0x128] sm:$0xff]
  %v112 = vld [vmem:[%s3 + $0x130] sm:$0xff]
  %v113 = vld [vmem:[%s3 + $0x138] sm:$0xff]
  %v114 = vld [vmem:[%s3 + $0x140] sm:$0xff]
  %v115 = vld [vmem:[%s3 + $0x148] sm:$0xff]
  %v116 = vld [vmem:[%s3 + $0x150] sm:$0xff]
  %v117 = vld [vmem:[%s3 + $0x158] sm:$0xff]
  %v118 = vld [vmem:[%s3 + $0x160] sm:$0xff]
  %v119 = vld [vmem:[%s3 + $0x168] sm:$0xff]
  %v120 = vld [vmem:[%s3 + $0x170] sm:$0xff]
  %v121 = vld [vmem:[%s3 + $0x178] sm:$0xff]
  %v122 = vld [vmem:[%s3 + $0x180] sm:$0xff]
  %v123 = vld [vmem:[%s3 + $0x188] sm:$0xff]
  %v124 = vld [vmem:[%s3 + $0x190] sm:$0xff]
  %v125 = vld [vmem:[%s3 + $0x198] sm:$0xff]
  %v126 = vld [vmem:[%s3 + $0x1a0] sm:$0xff]
  %v127 = vld [vmem:[%s3 + $0x1a8] sm:$0xff]
  %v128 = vld [vmem:[%s3 + $0x1b0] sm:$0xff]
  %v129 = vld [vmem:[%s3 + $0x1b8] sm:$0xff]
  %v130 = vld [vmem:[%s3 + $0x1c0] sm:$0xff]
  %v131 = vld [vmem:[%s3 + $0x1c8] sm:$0xff]
  %v132 = vld [vmem:[%s3 + $0x1d0] sm:$0xff]
  %v133 = vld [vmem:[%s3 + $0x1d8] sm:$0xff]
  %v134 = vld [vmem:[%s3 + $0x1e0] sm:$0xff]
  %v135 = vld [vmem:[%s3 + $0x1e8] sm:$0xff]
  %v136 = vld [vmem:[%s3 + $0x1f0] sm:$0xff]
  %v137 = vld [vmem:[%s3 + $0x1f8] sm:$0xff]
  %v138 = vld [vmem:[%s4] sm:$0xf]
  %v140 = vlaneseq
  %v141 = vshrl.u32 %v140, 7
  %v142 = vsub.s32 0, %v141
  %v143 = vrot.slane %v138, %v142
  %v144 = vlaneseq
  %v145 = vshrl.u32 %v144, 7
  %v146 = vsub.s32 1, %v145
  %v147 = vrot.slane %v138, %v146
  %v148 = vlaneseq
  %v149 = vshrl.u32 %v148, 7
  %v150 = vsub.s32 2, %v149
  %v151 = vrot.slane %v138, %v150
  %v152 = vlaneseq
  %v153 = vshrl.u32 %v152, 7
  %v154 = vsub.s32 3, %v153
  %v155 = vrot.slane %v138, %v154
  %v224 = vunpack.c.l.b16 %v74
  %v225 = vunpack.c.h.b16 %v74
  %v226 = vunpack.c.l.b16 %v75
  %v227 = vunpack.c.h.b16 %v75
  %v228 = vunpack.c.l.b16 %v76
  %v229 = vunpack.c.h.b16 %v76
  %v230 = vunpack.c.l.b16 %v77
  %v231 = vunpack.c.h.b16 %v77
  %v232 = vunpack.c.l.b16 %v78
  %v233 = vunpack.c.h.b16 %v78
  %v234 = vunpack.c.l.b16 %v79
  %v235 = vunpack.c.h.b16 %v79
  %v236 = vunpack.c.l.b16 %v80
  %v237 = vunpack.c.h.b16 %v80
  %v238 = vunpack.c.l.b16 %v81
  %v239 = vunpack.c.h.b16 %v81
  %v240 = vunpack.c.l.b16 %v82
  %v241 = vunpack.c.h.b16 %v82
  %v242 = vunpack.c.l.b16 %v83
  %v243 = vunpack.c.h.b16 %v83
  %v244 = vunpack.c.l.b16 %v84
  %v245 = vunpack.c.h.b16 %v84
  %v246 = vunpack.c.l.b16 %v85
  %v247 = vunpack.c.h.b16 %v85
  %v248 = vunpack.c.l.b16 %v86
  %v249 = vunpack.c.h.b16 %v86
  %v250 = vunpack.c.l.b16 %v87
  %v251 = vunpack.c.h.b16 %v87
  %v252 = vunpack.c.l.b16 %v88
  %v253 = vunpack.c.h.b16 %v88
  %v254 = vunpack.c.l.b16 %v89
  %v255 = vunpack.c.h.b16 %v89
  %v256 = vunpack.c.l.b16 %v90
  %v257 = vunpack.c.h.b16 %v90
  %v258 = vunpack.c.l.b16 %v91
  %v259 = vunpack.c.h.b16 %v91
  %v260 = vunpack.c.l.b16 %v92
  %v261 = vunpack.c.h.b16 %v92
  %v262 = vunpack.c.l.b16 %v93
  %v263 = vunpack.c.h.b16 %v93
  %v264 = vunpack.c.l.b16 %v94
  %v265 = vunpack.c.h.b16 %v94
  %v266 = vunpack.c.l.b16 %v95
  %v267 = vunpack.c.h.b16 %v95
  %v268 = vunpack.c.l.b16 %v96
  %v269 = vunpack.c.h.b16 %v96
  %v270 = vunpack.c.l.b16 %v97
  %v271 = vunpack.c.h.b16 %v97
  %v272 = vunpack.c.l.b16 %v98
  %v273 = vunpack.c.h.b16 %v98
  %v274 = vunpack.c.l.b16 %v99
  %v275 = vunpack.c.h.b16 %v99
  %v276 = vunpack.c.l.b16 %v100
  %v277 = vunpack.c.h.b16 %v100
  %v278 = vunpack.c.l.b16 %v101
  %v279 = vunpack.c.h.b16 %v101
  %v280 = vunpack.c.l.b16 %v102
  %v281 = vunpack.c.h.b16 %v102
  %v282 = vunpack.c.l.b16 %v103
  %v283 = vunpack.c.h.b16 %v103
  %v284 = vunpack.c.l.b16 %v104
  %v285 = vunpack.c.h.b16 %v104
  %v286 = vunpack.c.l.b16 %v105
  %v287 = vunpack.c.h.b16 %v105
  %v288 = vunpack.c.l.b16 %v106
  %v289 = vunpack.c.h.b16 %v106
  %v290 = vunpack.c.l.b16 %v107
  %v291 = vunpack.c.h.b16 %v107
  %v292 = vunpack.c.l.b16 %v108
  %v293 = vunpack.c.h.b16 %v108
  %v294 = vunpack.c.l.b16 %v109
  %v295 = vunpack.c.h.b16 %v109
  %v296 = vunpack.c.l.b16 %v110
  %v297 = vunpack.c.h.b16 %v110
  %v298 = vunpack.c.l.b16 %v111
  %v299 = vunpack.c.h.b16 %v111
  %v300 = vunpack.c.l.b16 %v112
  %v301 = vunpack.c.h.b16 %v112
  %v302 = vunpack.c.l.b16 %v113
  %v303 = vunpack.c.h.b16 %v113
  %v304 = vunpack.c.l.b16 %v114
  %v305 = vunpack.c.h.b16 %v114
  %v306 = vunpack.c.l.b16 %v115
  %v307 = vunpack.c.h.b16 %v115
  %v308 = vunpack.c.l.b16 %v116
  %v309 = vunpack.c.h.b16 %v116
  %v310 = vunpack.c.l.b16 %v117
  %v311 = vunpack.c.h.b16 %v117
  %v312 = vunpack.c.l.b16 %v118
  %v313 = vunpack.c.h.b16 %v118
  %v314 = vunpack.c.l.b16 %v119
  %v315 = vunpack.c.h.b16 %v119
  %v316 = vunpack.c.l.b16 %v120
  %v317 = vunpack.c.h.b16 %v120
  %v318 = vunpack.c.l.b16 %v121
  %v319 = vunpack.c.h.b16 %v121
  %v320 = vunpack.c.l.b16 %v122
  %v321 = vunpack.c.h.b16 %v122
  %v322 = vunpack.c.l.b16 %v123
  %v323 = vunpack.c.h.b16 %v123
  %v324 = vunpack.c.l.b16 %v124
  %v325 = vunpack.c.h.b16 %v124
  %v326 = vunpack.c.l.b16 %v125
  %v327 = vunpack.c.h.b16 %v125
  %v328 = vunpack.c.l.b16 %v126
  %v329 = vunpack.c.h.b16 %v126
  %v330 = vunpack.c.l.b16 %v127
  %v331 = vunpack.c.h.b16 %v127
  %v332 = vunpack.c.l.b16 %v128
  %v333 = vunpack.c.h.b16 %v128
  %v334 = vunpack.c.l.b16 %v129
  %v335 = vunpack.c.h.b16 %v129
  %v336 = vunpack.c.l.b16 %v130
  %v337 = vunpack.c.h.b16 %v130
  %v338 = vunpack.c.l.b16 %v131
  %v339 = vunpack.c.h.b16 %v131
  %v340 = vunpack.c.l.b16 %v132
  %v341 = vunpack.c.h.b16 %v132
  %v342 = vunpack.c.l.b16 %v133
  %v343 = vunpack.c.h.b16 %v133
  %v344 = vunpack.c.l.b16 %v134
  %v345 = vunpack.c.h.b16 %v134
  %v346 = vunpack.c.l.b16 %v135
  %v347 = vunpack.c.h.b16 %v135
  %v348 = vunpack.c.l.b16 %v136
  %v349 = vunpack.c.h.b16 %v136
  %v350 = vunpack.c.l.b16 %v137
  %v351 = vunpack.c.h.b16 %v137
  %v352 = vpack.c.b16 %v228, %v224
  %v353 = vpack.c.b16 %v229, %v225
  %v354 = vpack.c.b16 %v230, %v226
  %v355 = vpack.c.b16 %v231, %v227
  %v356 = vpack.c.b16 %v236, %v232
  %v357 = vpack.c.b16 %v237, %v233
  %v358 = vpack.c.b16 %v238, %v234
  %v359 = vpack.c.b16 %v239, %v235
  %v360 = vpack.c.b16 %v244, %v240
  %v361 = vpack.c.b16 %v245, %v241
  %v362 = vpack.c.b16 %v246, %v242
  %v363 = vpack.c.b16 %v247, %v243
  %v364 = vpack.c.b16 %v252, %v248
  %v365 = vpack.c.b16 %v253, %v249
  %v366 = vpack.c.b16 %v254, %v250
  %v367 = vpack.c.b16 %v255, %v251
  %v368 = vpack.c.b16 %v260, %v256
  %v369 = vpack.c.b16 %v261, %v257
  %v370 = vpack.c.b16 %v262, %v258
  %v371 = vpack.c.b16 %v263, %v259
  %v372 = vpack.c.b16 %v268, %v264
  %v373 = vpack.c.b16 %v269, %v265
  %v374 = vpack.c.b16 %v270, %v266
  %v375 = vpack.c.b16 %v271, %v267
  %v376 = vpack.c.b16 %v276, %v272
  %v377 = vpack.c.b16 %v277, %v273
  %v378 = vpack.c.b16 %v278, %v274
  %v379 = vpack.c.b16 %v279, %v275
  %v380 = vpack.c.b16 %v284, %v280
  %v381 = vpack.c.b16 %v285, %v281
  %v382 = vpack.c.b16 %v286, %v282
  %v383 = vpack.c.b16 %v287, %v283
  %v384 = vpack.c.b16 %v292, %v288
  %v385 = vpack.c.b16 %v293, %v289
  %v386 = vpack.c.b16 %v294, %v290
  %v387 = vpack.c.b16 %v295, %v291
  %v388 = vpack.c.b16 %v300, %v296
  %v389 = vpack.c.b16 %v301, %v297
  %v390 = vpack.c.b16 %v302, %v298
  %v391 = vpack.c.b16 %v303, %v299
  %v392 = vpack.c.b16 %v308, %v304
  %v393 = vpack.c.b16 %v309, %v305
  %v394 = vpack.c.b16 %v310, %v306
  %v395 = vpack.c.b16 %v311, %v307
  %v396 = vpack.c.b16 %v316, %v312
  %v397 = vpack.c.b16 %v317, %v313
  %v398 = vpack.c.b16 %v318, %v314
  %v399 = vpack.c.b16 %v319, %v315
  %v400 = vpack.c.b16 %v324, %v320
  %v401 = vpack.c.b16 %v325, %v321
  %v402 = vpack.c.b16 %v326, %v322
  %v403 = vpack.c.b16 %v327, %v323
  %v404 = vpack.c.b16 %v332, %v328
  %v405 = vpack.c.b16 %v333, %v329
  %v406 = vpack.c.b16 %v334, %v330
  %v407 = vpack.c.b16 %v335, %v331
  %v408 = vpack.c.b16 %v340, %v336
  %v409 = vpack.c.b16 %v341, %v337
  %v410 = vpack.c.b16 %v342, %v338
  %v411 = vpack.c.b16 %v343, %v339
  %v412 = vpack.c.b16 %v348, %v344
  %v413 = vpack.c.b16 %v349, %v345
  %v414 = vpack.c.b16 %v350, %v346
  %v415 = vpack.c.b16 %v351, %v347
  %480 = vmatprep.subr.bf16.mxu0 %v353
  %481 = vmatpush1.bf16.msra.mxu0 %v352
  %482 = vmatprep.subr.bf16.mxu0 %v357
  %483 = vmatpush1.bf16.msra.mxu0 %v356
  %484 = vmatprep.subr.bf16.mxu0 %v361
  %485 = vmatpush1.bf16.msra.mxu0 %v360
  %486 = vmatprep.subr.bf16.mxu0 %v365
  %487 = vmatpush1.bf16.msra.mxu0 %v364
  %488 = vmatprep.subr.bf16.mxu0 %v369
  %489 = vmatpush1.bf16.msra.mxu0 %v368
  %490 = vmatprep.subr.bf16.mxu0 %v373
  %491 = vmatpush1.bf16.msra.mxu0 %v372
  %492 = vmatprep.subr.bf16.mxu0 %v377
  %493 = vmatpush1.bf16.msra.mxu0 %v376
  %494 = vmatprep.subr.bf16.mxu0 %v381
  %495 = vmatpush1.bf16.msra.mxu0 %v380
  %496 = vmatprep.subr.bf16.mxu0 %v385
  %497 = vmatpush1.bf16.msra.mxu0 %v384
  %498 = vmatprep.subr.bf16.mxu0 %v389
  %499 = vmatpush1.bf16.msra.mxu0 %v388
  %500 = vmatprep.subr.bf16.mxu0 %v393
  %501 = vmatpush1.bf16.msra.mxu0 %v392
  %502 = vmatprep.subr.bf16.mxu0 %v397
  %503 = vmatpush1.bf16.msra.mxu0 %v396
  %504 = vmatprep.subr.bf16.mxu0 %v401
  %505 = vmatpush1.bf16.msra.mxu0 %v400
  %506 = vmatprep.subr.bf16.mxu0 %v405
  %507 = vmatpush1.bf16.msra.mxu0 %v404
  %508 = vmatprep.subr.bf16.mxu0 %v409
  %509 = vmatpush1.bf16.msra.mxu0 %v408
  %510 = vmatprep.subr.bf16.mxu0 %v413
  %511 = vmatpush1.bf16.msra.mxu0 %v412
  %512 = vmatprep.mubr.bf16.mxu0 %v73
  %513 = vmatmul.mubr.bf16.gmra.mrb[0].mxu0 %v72
  %v514 = vpop.f32.mrb[0].mxu0
  %v515 = vadd.f32 %v143, %v514
  %v516 = vpop.f32.mrb[0].mxu0
  %v517 = vadd.f32 %v147, %v516
  %v518 = vpop.f32.mrb[0].mxu0
  %v519 = vadd.f32 %v143, %v518
  %v520 = vpop.f32.mrb[0].mxu0
  %v521 = vadd.f32 %v147, %v520
  %522 = vdwg.mxu0
  %523 = vmatprep.subr.bf16.mxu0 %v355
  %524 = vmatpush1.bf16.msra.mxu0 %v354
  %525 = vmatprep.subr.bf16.mxu0 %v359
  %526 = vmatpush1.bf16.msra.mxu0 %v358
  %527 = vmatprep.subr.bf16.mxu0 %v363
  %528 = vmatpush1.bf16.msra.mxu0 %v362
  %529 = vmatprep.subr.bf16.mxu0 %v367
  %530 = vmatpush1.bf16.msra.mxu0 %v366
  %531 = vmatprep.subr.bf16.mxu0 %v371
  %532 = vmatpush1.bf16.msra.mxu0 %v370
  %533 = vmatprep.subr.bf16.mxu0 %v375
  %534 = vmatpush1.bf16.msra.mxu0 %v374
  %535 = vmatprep.subr.bf16.mxu0 %v379
  %536 = vmatpush1.bf16.msra.mxu0 %v378
  %537 = vmatprep.subr.bf16.mxu0 %v383
  %538 = vmatpush1.bf16.msra.mxu0 %v382
  %539 = vmatprep.subr.bf16.mxu0 %v387
  %540 = vmatpush1.bf16.msra.mxu0 %v386
  %541 = vmatprep.subr.bf16.mxu0 %v391
  %542 = vmatpush1.bf16.msra.mxu0 %v390
  %543 = vmatprep.subr.bf16.mxu0 %v395
  %544 = vmatpush1.bf16.msra.mxu0 %v394
  %545 = vmatprep.subr.bf16.mxu0 %v399
  %546 = vmatpush1.bf16.msra.mxu0 %v398
  %547 = vmatprep.subr.bf16.mxu0 %v403
  %548 = vmatpush1.bf16.msra.mxu0 %v402
  %549 = vmatprep.subr.bf16.mxu0 %v407
  %550 = vmatpush1.bf16.msra.mxu0 %v406
  %551 = vmatprep.subr.bf16.mxu0 %v411
  %552 = vmatpush1.bf16.msra.mxu0 %v410
  %553 = vmatprep.subr.bf16.mxu0 %v415
  %554 = vmatpush1.bf16.msra.mxu0 %v414
  %555 = vmatprep.mubr.bf16.mxu0 %v73
  %556 = vmatmul.mubr.bf16.gmra.mrb[0].mxu0 %v72
  %v557 = vpop.f32.mrb[0].mxu0
  %v558 = vadd.f32 %v151, %v557
  %v559 = vpop.f32.mrb[0].mxu0
  %v560 = vadd.f32 %v155, %v559
  %v561 = vpop.f32.mrb[0].mxu0
  %v562 = vadd.f32 %v151, %v561
  %v563 = vpop.f32.mrb[0].mxu0
  %v564 = vadd.f32 %v155, %v563
  %565 = vdwg.mxu0
  %v566 = vpack.c.bf16 %v519, %v515
  %v567 = vpack.c.bf16 %v521, %v517
  %v568 = vpack.c.bf16 %v562, %v558
  %v569 = vpack.c.bf16 %v564, %v560
  %v574 = vunpack.c.l.b16 %v566
  %v575 = vunpack.c.l.b16 %v567
  %v576 = vunpack.c.l.b16 %v568
  %v577 = vunpack.c.l.b16 %v569
  %v578 = vunpack.c.h.b16 %v566
  %v579 = vunpack.c.h.b16 %v567
  %v580 = vunpack.c.h.b16 %v568
  %v581 = vunpack.c.h.b16 %v569
  %v582 = vpack.c.b16 %v575, %v574
  %v583 = vpack.c.b16 %v577, %v576
  %v584 = vpack.c.b16 %v579, %v578
  %v585 = vpack.c.b16 %v581, %v580
  %590 = vst [vmem:[%s5] sm:$0xff] %v582
  %591 = vst [vmem:[%s5 + $0x8] sm:$0xff] %v583
  %592 = vst [vmem:[%s5 + $0x10] sm:$0xff] %v584
  %593 = vst [vmem:[%s5 + $0x18] sm:$0xff] %v585
  %s594 = smul.u32 0, 16
  %v595 = vlaneseq
  %v596 = vshrl.u32 %v595, 7
  %v597 = vadd.s32 %v596, 8
  %v598 = vstv %s594
  %v599 = vadd.s32 %v598, %v596
  %v600 = vadd.s32 %v598, %v597
  %vm601 = vcmp.lt.s32.totalorder %v599, 8
  %vm602 = vcmp.lt.s32.totalorder %v600, 8
  %v603 = vsel %vm601, 1, 0
  %v604 = vsel %vm602, 1, 0
  %vm605 = vcmp.eq.s32.totalorder %v603, 1
  %vm606 = vcmp.eq.s32.totalorder %v604, 1
  %v607 = vsel %vm605, %v515, 0.0
  %v608 = vsel %vm605, %v517, 0.0
  %v609 = vsel %vm605, %v558, 0.0
  %v610 = vsel %vm605, %v560, 0.0
  %v611 = vsel %vm606, %v519, 0.0
  %v612 = vsel %vm606, %v521, 0.0
  %v613 = vsel %vm606, %v562, 0.0
  %v614 = vsel %vm606, %v564, 0.0
  %v615 = vadd.f32 %v607, %v611
  %v616 = vrot.slane %v615, 4
  %v617 = vadd.f32 %v615, %v616
  %v618 = vrot.slane %v617, 2
  %v619 = vadd.f32 %v617, %v618
  %v620 = vrot.slane %v619, 1
  %v621 = vadd.f32 %v619, %v620
  %v622 = vadd.f32 %v608, %v612
  %v623 = vrot.slane %v622, 4
  %v624 = vadd.f32 %v622, %v623
  %v625 = vrot.slane %v624, 2
  %v626 = vadd.f32 %v624, %v625
  %v627 = vrot.slane %v626, 1
  %v628 = vadd.f32 %v626, %v627
  %v629 = vadd.f32 %v609, %v613
  %v630 = vrot.slane %v629, 4
  %v631 = vadd.f32 %v629, %v630
  %v632 = vrot.slane %v631, 2
  %v633 = vadd.f32 %v631, %v632
  %v634 = vrot.slane %v633, 1
  %v635 = vadd.f32 %v633, %v634
  %v636 = vadd.f32 %v610, %v614
  %v637 = vrot.slane %v636, 4
  %v638 = vadd.f32 %v636, %v637
  %v639 = vrot.slane %v638, 2
  %v640 = vadd.f32 %v638, %v639
  %v641 = vrot.slane %v640, 1
  %v642 = vadd.f32 %v640, %v641
  %v643 = vmul.f32 %v607, %v607
  %v644 = vmul.f32 %v608, %v608
  %v645 = vmul.f32 %v609, %v609
  %v646 = vmul.f32 %v610, %v610
  %v647 = vmul.f32 %v611, %v611
  %v648 = vmul.f32 %v612, %v612
  %v649 = vmul.f32 %v613, %v613
  %v650 = vmul.f32 %v614, %v614
  %v651 = vadd.f32 %v643, %v647
  %v652 = vrot.slane %v651, 4
  %v653 = vadd.f32 %v651, %v652
  %v654 = vrot.slane %v653, 2
  %v655 = vadd.f32 %v653, %v654
  %v656 = vrot.slane %v655, 1
  %v657 = vadd.f32 %v655, %v656
  %v658 = vadd.f32 %v644, %v648
  %v659 = vrot.slane %v658, 4
  %v660 = vadd.f32 %v658, %v659
  %v661 = vrot.slane %v660, 2
  %v662 = vadd.f32 %v660, %v661
  %v663 = vrot.slane %v662, 1
  %v664 = vadd.f32 %v662, %v663
  %v665 = vadd.f32 %v645, %v649
  %v666 = vrot.slane %v665, 4
  %v667 = vadd.f32 %v665, %v666
  %v668 = vrot.slane %v667, 2
  %v669 = vadd.f32 %v667, %v668
  %v670 = vrot.slane %v669, 1
  %v671 = vadd.f32 %v669, %v670
  %v672 = vadd.f32 %v646, %v650
  %v673 = vrot.slane %v672, 4
  %v674 = vadd.f32 %v672, %v673
  %v675 = vrot.slane %v674, 2
  %v676 = vadd.f32 %v674, %v675
  %v677 = vrot.slane %v676, 1
  %v678 = vadd.f32 %v676, %v677
  %vm679 = vcmask 1040384
  %v680 = vsel %vm679, %v621, %v657
  %v681 = vsel %vm679, %v628, %v664
  %v682 = vsel %vm679, %v635, %v671
  %v683 = vsel %vm679, %v642, %v678
  %v688 = vcombine.low %v680, %v681
  %v689 = vcombine.low %v682, %v683
  %v691 = vunpack.c.l.s4 1983009808
  %v692 = vunpack.c.0.s8 %v691
  %v693 = vlaneseq
  %v694 = vshrl.u32 %v693, 7
  %v695 = vsub.s32 %v692, %v694
  %v696 = vrot.slane %v688, %v695
  %v698 = vunpack.c.l.s4 1983009808
  %v699 = vunpack.c.0.s8 %v698
  %v700 = vlaneseq
  %v701 = vshrl.u32 %v700, 7
  %v702 = vsub.s32 %v699, %v701
  %v703 = vrot.slane %v689, %v702
  %v704 = vcombine.low %v696, %v703
  %706 = vst [vmem:[%s6] sm:$0xff] %v704
  // Predicated region
  $region22: #{discriminator_forward.8} parent=0 // pred_check
    _
  $region23: #{discriminator_forward.8} parent=0 // pred_check_branch
    %708 = sbr.rel (0) target = $region25
  $region24: #{discriminator_forward.8} parent=0 // pred_region
    _
  $region25: #{discriminator_forward.8} parent=0 // pred_fallthru
    _
  // Predicated region
  $region26: #{discriminator_forward.8} parent=0 // pred_check
    _
  $region27: #{discriminator_forward.8} parent=0 // pred_check_branch
    %710 = sbr.rel (0) target = $region29
  $region28: #{discriminator_forward.8} parent=0 // pred_region
    _
  $region29: #{discriminator_forward.8} parent=0 // pred_fallthru
    _
  // Predicated region
  $region30: #{discriminator_forward.8} parent=0 // pred_check
    _
  $region31: #{discriminator_forward.8} parent=0 // pred_check_branch
    %712 = sbr.rel (0) target = $region33
  $region32: #{discriminator_forward.8} parent=0 // pred_region
    _
  $region33: #{discriminator_forward.8} parent=0 // pred_fallthru
    _
  // Predicated region
  $region34: #{discriminator_forward.8} parent=0 // pred_check
    _
  $region35: #{discriminator_forward.8} parent=0 // pred_check_branch
    %714 = sbr.rel (0) target = $region37
  $region36: #{discriminator_forward.8} parent=0 // pred_region
    _
  $region37: #{discriminator_forward.8} parent=0 // pred_fallthru
    _

// kernel: discriminator_forward.9
$region0: #{discriminator_forward.9}
  #allocation0 [shape = 'u32[]', space=smem, size = 0x4, offset = 0x4, fixed_abs, tag = 'smem constant byte address 0x4 - core index']
  #allocation1 [shape = 'u32[144,128]{1,0:T(1,128)}', space=vmem, size = 0x12000, scoped, tag = 'internal scratch']
  #allocation2 [shape = 'f32[1,1]{1,0:T(1,128)S(1)}', space=vmem, size = 0x200, scoped, tag = 'scoped memory for discriminator_forward.9']
  %s0 = inlined_call_operand.vmem [shape: bf16[16,512], index: 0, kind: input, shape index: {}]
  %s1 = inlined_call_operand.vmem [shape: f32[1,512], index: 1, kind: input, shape index: {}]
  %s2 = inlined_call_operand.vmem [shape: f32[1,512], index: 2, kind: input, shape index: {}]
  %s3 = inlined_call_operand.vmem [shape: f32[1,512], index: 3, kind: input, shape index: {}]
  %s4 = inlined_call_operand.<no memory space> [shape: f32[1,1], index: 4, kind: input, shape index: {}]
  %s5 = inlined_call_operand.vmem [shape: f32[16,1], index: 5, kind: output, shape index: {}]
  %s6 = sld [smem:[#allocation0]]
  $region30: #{discriminator_forward.9} parent=0
    _
  %s8 = ssub.s32 1, %s6
  %s9 = scalar_select 0, %s8, %s6
  %v10 = vstv %s4
  %11 = vst [vmem:[#allocation2] sm:$0x1] %v10
  // Predicated region
  $region2: #{discriminator_forward.9} parent=0 // pred_check
    _
  $region3: #{discriminator_forward.9} parent=0 // pred_check_branch
    %13 = sbr.rel (0) target = $region5
  $region4: #{discriminator_forward.9} parent=0 // pred_region
    _
  $region5: #{discriminator_forward.9} parent=0 // pred_fallthru
    _
  // Predicated region
  $region6: #{discriminator_forward.9} parent=0 // pred_check
    _
  $region7: #{discriminator_forward.9} parent=0 // pred_check_branch
    %15 = sbr.rel (0) target = $region9
  $region8: #{discriminator_forward.9} parent=0 // pred_region
    _
  $region9: #{discriminator_forward.9} parent=0 // pred_fallthru
    _
  // Predicated region
  $region10: #{discriminator_forward.9} parent=0 // pred_check
    _
  $region11: #{discriminator_forward.9} parent=0 // pred_check_branch
    %17 = sbr.rel (0) target = $region13
  $region12: #{discriminator_forward.9} parent=0 // pred_region
    _
  $region13: #{discriminator_forward.9} parent=0 // pred_fallthru
    _
  // Predicated region
  $region14: #{discriminator_forward.9} parent=0 // pred_check
    _
  $region15: #{discriminator_forward.9} parent=0 // pred_check_branch
    %19 = sbr.rel (0) target = $region17
  $region16: #{discriminator_forward.9} parent=0 // pred_region
    _
  $region17: #{discriminator_forward.9} parent=0 // pred_fallthru
    _
  // Predicated region
  $region18: #{discriminator_forward.9} parent=0 // pred_check
    _
  $region19: #{discriminator_forward.9} parent=0 // pred_check_branch
    %21 = sbr.rel (0) target = $region21
  $region20: #{discriminator_forward.9} parent=0 // pred_region
    _
  $region21: #{discriminator_forward.9} parent=0 // pred_fallthru
    _
  %v22 = vld [vmem:[%s0] sm:$0xff]
  %v23 = vld [vmem:[%s0 + $0x8] sm:$0xff]
  %v24 = vld [vmem:[%s0 + $0x10] sm:$0xff]
  %v25 = vld [vmem:[%s0 + $0x18] sm:$0xff]
  %v26 = vunpack.c.l.bf16 %v22
  %v27 = vunpack.c.h.bf16 %v22
  %v28 = vunpack.c.l.bf16 %v23
  %v29 = vunpack.c.h.bf16 %v23
  %v30 = vunpack.c.l.bf16 %v24
  %v31 = vunpack.c.h.bf16 %v24
  %v32 = vunpack.c.l.bf16 %v25
  %v33 = vunpack.c.h.bf16 %v25
  %v34 = vld [vmem:[%s1] sm:$0xf]
  %v36 = vlaneseq
  %v37 = vshrl.u32 %v36, 7
  %v38 = vsub.s32 0, %v37
  %v39 = vrot.slane %v34, %v38
  %v40 = vlaneseq
  %v41 = vshrl.u32 %v40, 7
  %v42 = vsub.s32 1, %v41
  %v43 = vrot.slane %v34, %v42
  %v44 = vlaneseq
  %v45 = vshrl.u32 %v44, 7
  %v46 = vsub.s32 2, %v45
  %v47 = vrot.slane %v34, %v46
  %v48 = vlaneseq
  %v49 = vshrl.u32 %v48, 7
  %v50 = vsub.s32 3, %v49
  %v51 = vrot.slane %v34, %v50
  %v56 = vmul.f32 %v26, %v39
  %v57 = vmul.f32 %v27, %v43
  %v58 = vmul.f32 %v28, %v47
  %v59 = vmul.f32 %v29, %v51
  %v60 = vmul.f32 %v30, %v39
  %v61 = vmul.f32 %v31, %v43
  %v62 = vmul.f32 %v32, %v47
  %v63 = vmul.f32 %v33, %v51
  %v64 = vld [vmem:[%s2] sm:$0xf]
  %v66 = vlaneseq
  %v67 = vshrl.u32 %v66, 7
  %v68 = vsub.s32 0, %v67
  %v69 = vrot.slane %v64, %v68
  %v70 = vlaneseq
  %v71 = vshrl.u32 %v70, 7
  %v72 = vsub.s32 1, %v71
  %v73 = vrot.slane %v64, %v72
  %v74 = vlaneseq
  %v75 = vshrl.u32 %v74, 7
  %v76 = vsub.s32 2, %v75
  %v77 = vrot.slane %v64, %v76
  %v78 = vlaneseq
  %v79 = vshrl.u32 %v78, 7
  %v80 = vsub.s32 3, %v79
  %v81 = vrot.slane %v64, %v80
  %v86 = vadd.f32 %v56, %v69
  %v87 = vadd.f32 %v57, %v73
  %v88 = vadd.f32 %v58, %v77
  %v89 = vadd.f32 %v59, %v81
  %v90 = vadd.f32 %v60, %v69
  %v91 = vadd.f32 %v61, %v73
  %v92 = vadd.f32 %v62, %v77
  %v93 = vadd.f32 %v63, %v81
  %vm94 = vcmp.ge.f32.partialorder %v86, 0.0
  %vm95 = vcmp.ge.f32.partialorder %v87, 0.0
  %vm96 = vcmp.ge.f32.partialorder %v88, 0.0
  %vm97 = vcmp.ge.f32.partialorder %v89, 0.0
  %vm98 = vcmp.ge.f32.partialorder %v90, 0.0
  %vm99 = vcmp.ge.f32.partialorder %v91, 0.0
  %vm100 = vcmp.ge.f32.partialorder %v92, 0.0
  %vm101 = vcmp.ge.f32.partialorder %v93, 0.0
  %v102 = vmul.f32 %v86, 0.01
  %v103 = vmul.f32 %v87, 0.01
  %v104 = vmul.f32 %v88, 0.01
  %v105 = vmul.f32 %v89, 0.01
  %v106 = vmul.f32 %v90, 0.01
  %v107 = vmul.f32 %v91, 0.01
  %v108 = vmul.f32 %v92, 0.01
  %v109 = vmul.f32 %v93, 0.01
  %v110 = vsel %vm94, %v86, %v102
  %v111 = vsel %vm95, %v87, %v103
  %v112 = vsel %vm96, %v88, %v104
  %v113 = vsel %vm97, %v89, %v105
  %v114 = vsel %vm98, %v90, %v106
  %v115 = vsel %vm99, %v91, %v107
  %v116 = vsel %vm100, %v92, %v108
  %v117 = vsel %vm101, %v93, %v109
  %v118 = vld [vmem:[%s3] sm:$0xf]
  %v120 = vlaneseq
  %v121 = vshrl.u32 %v120, 7
  %v122 = vsub.s32 0, %v121
  %v123 = vrot.slane %v118, %v122
  %v124 = vlaneseq
  %v125 = vshrl.u32 %v124, 7
  %v126 = vsub.s32 1, %v125
  %v127 = vrot.slane %v118, %v126
  %v128 = vlaneseq
  %v129 = vshrl.u32 %v128, 7
  %v130 = vsub.s32 2, %v129
  %v131 = vrot.slane %v118, %v130
  %v132 = vlaneseq
  %v133 = vshrl.u32 %v132, 7
  %v134 = vsub.s32 3, %v133
  %v135 = vrot.slane %v118, %v134
  %v140 = vmul.f32 %v110, %v123
  %v141 = vmul.f32 %v111, %v127
  %v142 = vmul.f32 %v112, %v131
  %v143 = vmul.f32 %v113, %v135
  %v144 = vmul.f32 %v114, %v123
  %v145 = vmul.f32 %v115, %v127
  %v146 = vmul.f32 %v116, %v131
  %v147 = vmul.f32 %v117, %v135
  %v148 = vadd.f32 %v140, %v141
  %v149 = vadd.f32 %v148, %v142
  %v150 = vadd.f32 %v149, %v143
  %151 = vadd.xlane.f32.xlu0 %v150
  %v152 = vpop.xlane.xlu0 %151
  %v153 = vadd.f32 %v144, %v145
  %v154 = vadd.f32 %v153, %v146
  %v155 = vadd.f32 %v154, %v147
  %156 = vadd.xlane.f32.xlu0 %v155
  %v157 = vpop.xlane.xlu0 %156
  %v158 = vld [vmem:[#allocation2] sm:$0x1]
  %v160 = vlaneseq
  %v161 = vshrl.u32 %v160, 7
  %v162 = vsub.s32 0, %v161
  %v163 = vrot.slane %v158, %v162
  %v165 = vadd.f32 %v152, %v163
  %v166 = vadd.f32 %v157, %v163
  %v167 = vsub.f32 0.0, %v165
  %v168 = vsub.f32 0.0, %v166
  %v169 = vmul.f32 %v167, 1.442695
  %v170 = vpow.pop %v169
  %v171 = vmul.f32 %v168, 1.442695
  %v172 = vpow.pop %v171
  %v173 = vadd.f32 %v170, 1.0
  %v174 = vadd.f32 %v172, 1.0
  %v175 = vrcp.pop %v173
  %v176 = vmul.f32 1.0, %v175
  %v177 = vrcp.pop %v174
  %v178 = vmul.f32 1.0, %v177
  %vm179 = vcmask 7168
  %180 = vst.msk [vmem:[%s5] sm:$0xff] %vm179, %v176
  %181 = vst.msk [vmem:[%s5 + $0x8] sm:$0xff] %vm179, %v178
  // Predicated region
  $region22: #{discriminator_forward.9} parent=0 // pred_check
    _
  $region23: #{discriminator_forward.9} parent=0 // pred_check_branch
    %183 = sbr.rel (0) target = $region25
  $region24: #{discriminator_forward.9} parent=0 // pred_region
    _
  $region25: #{discriminator_forward.9} parent=0 // pred_fallthru
    _
  // Predicated region
  $region26: #{discriminator_forward.9} parent=0 // pred_check
    _
  $region27: #{discriminator_forward.9} parent=0 // pred_check_branch
    %185 = sbr.rel (0) target = $region29
  $region28: #{discriminator_forward.9} parent=0 // pred_region
    _
  $region29: #{discriminator_forward.9} parent=0 // pred_fallthru
    _

</llo_original>
